<compile_context>
chip_gen: v6e
topology: v6e:2x2x1
jax: 0.10.0
libtpu: 0.0.40
codegen_flags: <defaults>
</compile_context>

<pallas_src>
import jax
import jax.numpy as jnp
import numpy as np
from jax.experimental import pallas as pl
from jax.experimental.pallas import tpu as pltpu

BN_EPS = 1e-5
_VMEM_LIMIT = 32 * 1024 * 1024   # safe headroom on v5e/v6e (128 MiB) and v7x (64 MiB physical)


def _adder_1x1(x, w):
    """AdderNet 1x1 'conv' in lane-dense layout.

    x: (Cin, TS) f32, w: (Cout, Cin) f32  ->  (Cout, TS) f32
    out[co, s] = -sum_ci |x[ci, s] - w[co, ci]|
    Weight is loaded once by the caller; the Cin loop is unrolled (small, static) and each
    iteration is a full-lane (Cout, TS) VPU abs/add — no per-iteration ref loads.
    """
    cout, cin = w.shape
    acc = jnp.zeros((cout, x.shape[-1]), jnp.float32)
    for ci in range(cin):
        acc = acc + jnp.abs(x[ci:ci + 1, :] - w[:, ci:ci + 1])
    return -acc


def _accumulate_stats(stats_ref, h):
    """stats_ref: (C, 2) resident accumulator; col 0 = sum(h), col 1 = sum(h*h).

    Single sweep over h (lane-axis reduces), no second pass / no centered tensor.
    """
    s = jnp.sum(h, axis=1, keepdims=True)        # (C, 1)
    ss = jnp.sum(h * h, axis=1, keepdims=True)   # (C, 1)
    stats_ref[...] += jnp.concatenate([s, ss], axis=1)


def _is_first_step():
    return (pl.program_id(0) == 0) & (pl.program_id(1) == 0)


# ---------------- pass 1: adder-conv #1 + stats ----------------
def adder_stats_kernel(x_ref, w_ref, h_ref, stats_ref):
    @pl.when(_is_first_step())
    def _():
        stats_ref[...] = jnp.zeros_like(stats_ref)

    h = _adder_1x1(x_ref[...], w_ref[...])       # (C, TS)
    h_ref[...] = h
    _accumulate_stats(stats_ref, h)


# ---------------- pass 2: BN#1 + ReLU + adder-conv #2 + stats ----------------
def bn_relu_adder_stats_kernel(h1_ref, sc_ref, sh_ref, w_ref, h2_ref, stats_ref):
    @pl.when(_is_first_step())
    def _():
        stats_ref[...] = jnp.zeros_like(stats_ref)

    a = jnp.maximum(h1_ref[...] * sc_ref[...] + sh_ref[...], 0.0)   # (C, TS)
    h2 = _adder_1x1(a, w_ref[...])                                   # (C, TS)
    h2_ref[...] = h2
    _accumulate_stats(stats_ref, h2)


# ---------------- pass 3: BN#2 + residual add + ReLU ----------------
def bn_residual_relu_kernel(h2_ref, sc_ref, sh_ref, x_ref, o_ref):
    o_ref[...] = jnp.maximum(
        h2_ref[...] * sc_ref[...] + sh_ref[...] + x_ref[...], 0.0)


def _bn_scale_shift(stats, gamma, beta, count):
    """Fold batch statistics + affine params into per-channel scale/shift (tiny jnp glue)."""
    total = stats[:, 0]
    total_sq = stats[:, 1]
    mean = total / count
    # biased variance (BatchNorm training-mode normalization); guard f32 cancellation.
    var = jnp.maximum(total_sq / count - mean * mean, 0.0)
    inv = gamma * jax.lax.rsqrt(var + BN_EPS)
    scale = inv.reshape(-1, 1)
    shift = (beta - mean * inv).reshape(-1, 1)
    return scale, shift


def _pick_tile(s, max_lanes=4096):
    """Largest multiple-of-128 divisor of s up to max_lanes; full extent otherwise."""
    if s % 128 != 0:
        return s
    best = 128
    t = 128
    while t <= min(max_lanes, s):
        if s % t == 0:
            best = t
        t += 128
    return best


def resblock_forward(x_nchw, w1, g1, b1, w2, g2, b2):
    """x_nchw: (N, C, H, W) float32. Returns (N, C, H, W) float32."""
    N, C, H, W = x_nchw.shape
    S = H * W
    x3 = x_nchw.reshape(N, C, S).astype(jnp.float32)   # lane-dense, no transpose

    TS = _pick_tile(S)
    grid = (N, S // TS)

    tile_spec = pl.BlockSpec((None, C, TS), lambda n, t: (n, 0, t))

    def resident(shape):
        zero_blocks = (0,) * len(shape)
        return pl.BlockSpec(shape, lambda n, t: zero_blocks)

    acc_params = pltpu.CompilerParams(
        dimension_semantics=("arbitrary", "arbitrary"),   # stats accumulator resident across grid
        vmem_limit_bytes=_VMEM_LIMIT)
    par_params = pltpu.CompilerParams(
        dimension_semantics=("parallel", "parallel"),
        vmem_limit_bytes=_VMEM_LIMIT)

    tile_out = jax.ShapeDtypeStruct((N, C, S), jnp.float32)
    stats_out = jax.ShapeDtypeStruct((C, 2), jnp.float32)

    # ---- pass 1: adder #1 + batch statistics ----
    h1, stats1 = pl.pallas_call(
        adder_stats_kernel,
        grid=grid,
        in_specs=[tile_spec, resident((C, C))],
        out_specs=[tile_spec, resident((C, 2))],
        out_shape=[tile_out, stats_out],
        compiler_params=acc_params,
    )(x3, w1)

    scale1, shift1 = _bn_scale_shift(stats1, g1, b1, N * S)

    # ---- pass 2: BN#1 + ReLU + adder #2 + batch statistics ----
    h2, stats2 = pl.pallas_call(
        bn_relu_adder_stats_kernel,
        grid=grid,
        in_specs=[tile_spec, resident((C, 1)), resident((C, 1)), resident((C, C))],
        out_specs=[tile_spec, resident((C, 2))],
        out_shape=[tile_out, stats_out],
        compiler_params=acc_params,
    )(h1, scale1, shift1, w2)

    scale2, shift2 = _bn_scale_shift(stats2, g2, b2, N * S)

    # ---- pass 3: BN#2 + residual + ReLU ----
    out3 = pl.pallas_call(
        bn_residual_relu_kernel,
        grid=grid,
        in_specs=[tile_spec, resident((C, 1)), resident((C, 1)), tile_spec],
        out_specs=tile_spec,
        out_shape=tile_out,
        compiler_params=par_params,
    )(h2, scale2, shift2, x3)

    return out3.reshape(N, C, H, W)


def resblock_reference(x_nchw, w1, g1, b1, w2, g2, b2):
    """Pure-JAX reference (same math) for a sanity check."""
    N, C, H, W = x_nchw.shape
    x = x_nchw.reshape(N, C, H * W).astype(jnp.float32)     # (N, C, S)

    def adder(a, w):
        # a: (N, Cin, S), w: (Cout, Cin) -> (N, Cout, S)
        return -jnp.sum(jnp.abs(a[:, None, :, :] - w[None, :, :, None]), axis=2)

    def bn(h, g, b):
        m = jnp.mean(h, axis=(0, 2), keepdims=True)
        v = jnp.mean((h - m) ** 2, axis=(0, 2), keepdims=True)
        return g[None, :, None] * (h - m) / jnp.sqrt(v + BN_EPS) + b[None, :, None]

    h = jnp.maximum(bn(adder(x, w1), g1, b1), 0.0)
    h = bn(adder(h, w2), g2, b2)
    out = jnp.maximum(h + x, 0.0)
    return out.reshape(N, C, H, W)


if __name__ == "__main__":
    # Small deterministic setup: batch=2, channels=4 (in == out), spatial=16x16.
    N, C, H, W = 2, 4, 16, 16
    key = jax.random.PRNGKey(0)
    kx, kw1, kw2, kg1, kb1, kg2, kb2 = jax.random.split(key, 7)

    x = jax.random.normal(kx, (N, C, H, W), dtype=jnp.float32)

    # adder-conv weights: (Cout, Cin) for the 1x1 kernels (xavier-normal-ish scale)
    scale = float(np.sqrt(2.0 / (C + C)))
    w1 = jax.random.normal(kw1, (C, C), dtype=jnp.float32) * scale
    w2 = jax.random.normal(kw2, (C, C), dtype=jnp.float32) * scale

    # BatchNorm affine params (deterministic, non-trivial)
    g1 = 1.0 + 0.1 * jax.random.normal(kg1, (C,), dtype=jnp.float32)
    b1 = 0.1 * jax.random.normal(kb1, (C,), dtype=jnp.float32)
    g2 = 1.0 + 0.1 * jax.random.normal(kg2, (C,), dtype=jnp.float32)
    b2 = 0.1 * jax.random.normal(kb2, (C,), dtype=jnp.float32)

    fwd = jax.jit(resblock_forward)
    out = jax.block_until_ready(fwd(x, w1, g1, b1, w2, g2, b2))

    ref = jax.block_until_ready(resblock_reference(x, w1, g1, b1, w2, g2, b2))
    np.testing.assert_allclose(np.asarray(out), np.asarray(ref), rtol=1e-3, atol=1e-3)

    print("KERNEL_OK")
</pallas_src>

<mosaic_0001>
module attributes {stable_mosaic.version = 11 : i64} {
  func.func @adder_stats_kernel(%arg0: i32, %arg1: i32, %arg2: memref<1x4x256xf32, #tpu.memory_space<vmem>>, %arg3: memref<4x4xf32, #tpu.memory_space<vmem>>, %arg4: memref<1x4x256xf32, #tpu.memory_space<vmem>>, %arg5: memref<4x2xf32, #tpu.memory_space<vmem>>) attributes {dimension_semantics = [#tpu.dimension_semantics<arbitrary>, #tpu.dimension_semantics<arbitrary>], iteration_bounds = array<i64: 2, 1>, scalar_prefetch = 0 : i64, scratch_operands = 0 : i64, tpu.core_type = #tpu.core_type<tc>, window_params = [{transform_indices = @transform_0, window_bounds = array<i64: 1, 4, 256>}, {pipeline_mode = #tpu.pipeline_mode<synchronous>, transform_indices = @transform_1, window_bounds = array<i64: 4, 4>}, {transform_indices = @transform_2, window_bounds = array<i64: 1, 4, 256>}, {pipeline_mode = #tpu.pipeline_mode<synchronous>, transform_indices = @transform_3, window_bounds = array<i64: 4, 2>}]} {
    %c0_i32 = arith.constant 0 : i32
    %0 = arith.cmpi eq, %arg0, %c0_i32 : i32
    %c0_i32_0 = arith.constant 0 : i32
    %1 = arith.cmpi eq, %arg1, %c0_i32_0 : i32
    %2 = arith.andi %0, %1 : i1
    %3 = arith.extui %2 : i1 to i32
    %c0_i32_1 = arith.constant 0 : i32
    %4 = arith.cmpi ne, %3, %c0_i32_1 : i32
    scf.if %4 {
      %cst_16 = arith.constant 0.000000e+00 : f32
      %51 = vector.broadcast %cst_16 : f32 to vector<4x2xf32>
      %c0_17 = arith.constant 0 : index
      %c0_18 = arith.constant 0 : index
      %52 = vector.load %arg5[%c0_17, %c0_18] : memref<4x2xf32, #tpu.memory_space<vmem>>, vector<4x2xf32>
      tpu.vector_store %arg5[%c0_17, %c0_18], %51 {strides = array<i32>} : memref<4x2xf32, #tpu.memory_space<vmem>>, vector<4x2xf32>,
    } else {
    }
    %c0 = arith.constant 0 : index
    %c0_2 = arith.constant 0 : index
    %c0_3 = arith.constant 0 : index
    %5 = vector.load %arg2[%c0, %c0_2, %c0_3] : memref<1x4x256xf32, #tpu.memory_space<vmem>>, vector<1x4x256xf32>
    %6 = vector.shape_cast %5 : vector<1x4x256xf32> to vector<4x256xf32>
    %c0_4 = arith.constant 0 : index
    %c0_5 = arith.constant 0 : index
    %7 = vector.load %arg3[%c0_4, %c0_5] : memref<4x4xf32, #tpu.memory_space<vmem>>, vector<4x4xf32>
    %cst = arith.constant 0.000000e+00 : f32
    %8 = vector.broadcast %cst : f32 to vector<4x256xf32>
    %9 = vector.extract_strided_slice %6 {offsets = [0, 0], sizes = [1, 256], strides = [1, 1]} : vector<4x256xf32> to vector<1x256xf32>
    %10 = vector.extract_strided_slice %7 {offsets = [0, 0], sizes = [4, 1], strides = [1, 1]} : vector<4x4xf32> to vector<4x1xf32>
    %11 = vector.broadcast %9 : vector<1x256xf32> to vector<4x256xf32>
    %12 = vector.broadcast %10 : vector<4x1xf32> to vector<4x256xf32>
    %13 = arith.subf %11, %12 : vector<4x256xf32>
    %14 = math.absf %13 : vector<4x256xf32>
    %15 = arith.addf %8, %14 : vector<4x256xf32>
    %16 = vector.extract_strided_slice %6 {offsets = [1, 0], sizes = [1, 256], strides = [1, 1]} : vector<4x256xf32> to vector<1x256xf32>
    %17 = vector.extract_strided_slice %7 {offsets = [0, 1], sizes = [4, 1], strides = [1, 1]} : vector<4x4xf32> to vector<4x1xf32>
    %18 = vector.broadcast %16 : vector<1x256xf32> to vector<4x256xf32>
    %19 = vector.broadcast %17 : vector<4x1xf32> to vector<4x256xf32>
    %20 = arith.subf %18, %19 : vector<4x256xf32>
    %21 = math.absf %20 : vector<4x256xf32>
    %22 = arith.addf %15, %21 : vector<4x256xf32>
    %23 = vector.extract_strided_slice %6 {offsets = [2, 0], sizes = [1, 256], strides = [1, 1]} : vector<4x256xf32> to vector<1x256xf32>
    %24 = vector.extract_strided_slice %7 {offsets = [0, 2], sizes = [4, 1], strides = [1, 1]} : vector<4x4xf32> to vector<4x1xf32>
    %25 = vector.broadcast %23 : vector<1x256xf32> to vector<4x256xf32>
    %26 = vector.broadcast %24 : vector<4x1xf32> to vector<4x256xf32>
    %27 = arith.subf %25, %26 : vector<4x256xf32>
    %28 = math.absf %27 : vector<4x256xf32>
    %29 = arith.addf %22, %28 : vector<4x256xf32>
    %30 = vector.extract_strided_slice %6 {offsets = [3, 0], sizes = [1, 256], strides = [1, 1]} : vector<4x256xf32> to vector<1x256xf32>
    %31 = vector.extract_strided_slice %7 {offsets = [0, 3], sizes = [4, 1], strides = [1, 1]} : vector<4x4xf32> to vector<4x1xf32>
    %32 = vector.broadcast %30 : vector<1x256xf32> to vector<4x256xf32>
    %33 = vector.broadcast %31 : vector<4x1xf32> to vector<4x256xf32>
    %34 = arith.subf %32, %33 : vector<4x256xf32>
    %35 = math.absf %34 : vector<4x256xf32>
    %36 = arith.addf %29, %35 : vector<4x256xf32>
    %cst_6 = arith.constant 0.000000e+00 : f32
    %37 = vector.broadcast %cst_6 : f32 to vector<4x256xf32>
    %38 = arith.subf %37, %36 : vector<4x256xf32>
    %c0_7 = arith.constant 0 : index
    %c0_8 = arith.constant 0 : index
    %c0_9 = arith.constant 0 : index
    %39 = vector.load %arg4[%c0_7, %c0_8, %c0_9] : memref<1x4x256xf32, #tpu.memory_space<vmem>>, vector<1x4x256xf32>
    %40 = vector.shape_cast %39 : vector<1x4x256xf32> to vector<4x256xf32>
    %41 = vector.shape_cast %38 : vector<4x256xf32> to vector<1x4x256xf32>
    tpu.vector_store %arg4[%c0_7, %c0_8, %c0_9], %41 {strides = array<i32>} : memref<1x4x256xf32, #tpu.memory_space<vmem>>, vector<1x4x256xf32>,
    %cst_10 = arith.constant dense<0.000000e+00> : vector<4xf32>
    %42 = vector.multi_reduction <add>, %38, %cst_10 [1] : vector<4x256xf32> to vector<4xf32>
    %43 = vector.shape_cast %42 : vector<4xf32> to vector<4x1xf32>
    %44 = arith.mulf %38, %38 : vector<4x256xf32>
    %cst_11 = arith.constant dense<0.000000e+00> : vector<4xf32>
    %45 = vector.multi_reduction <add>, %44, %cst_11 [1] : vector<4x256xf32> to vector<4xf32>
    %46 = vector.shape_cast %45 : vector<4xf32> to vector<4x1xf32>
    %c0_12 = arith.constant 0 : index
    %c0_13 = arith.constant 0 : index
    %47 = vector.load %arg5[%c0_12, %c0_13] : memref<4x2xf32, #tpu.memory_space<vmem>>, vector<4x2xf32>
    %48 = tpu.concatenate %43, %46 in 1 : vector<4x1xf32>, vector<4x1xf32> -> vector<4x2xf32>
    %49 = arith.addf %47, %48 : vector<4x2xf32>
    %c0_14 = arith.constant 0 : index
    %c0_15 = arith.constant 0 : index
    %50 = vector.load %arg5[%c0_14, %c0_15] : memref<4x2xf32, #tpu.memory_space<vmem>>, vector<4x2xf32>
    tpu.vector_store %arg5[%c0_14, %c0_15], %49 {strides = array<i32>} : memref<4x2xf32, #tpu.memory_space<vmem>>, vector<4x2xf32>,
    return
  }
  func.func @transform_0(%arg0: i32, %arg1: i32) -> (i32, i32, i32) {
    %c0_i32 = arith.constant 0 : i32
    %c0_i32_0 = arith.constant 0 : i32
    return %arg0, %c0_i32, %arg1 : i32, i32, i32
  }
  func.func @transform_1(%arg0: i32, %arg1: i32) -> (i32, i32) {
    %c0_i32 = arith.constant 0 : i32
    %c0_i32_0 = arith.constant 0 : i32
    %c0_i32_1 = arith.constant 0 : i32
    return %c0_i32, %c0_i32_0 : i32, i32
  }
  func.func @transform_2(%arg0: i32, %arg1: i32) -> (i32, i32, i32) {
    %c0_i32 = arith.constant 0 : i32
    %c0_i32_0 = arith.constant 0 : i32
    return %arg0, %c0_i32, %arg1 : i32, i32, i32
  }
  func.func @transform_3(%arg0: i32, %arg1: i32) -> (i32, i32) {
    %c0_i32 = arith.constant 0 : i32
    %c0_i32_0 = arith.constant 0 : i32
    %c0_i32_1 = arith.constant 0 : i32
    return %c0_i32, %c0_i32_0 : i32, i32
  }
}

module attributes {stable_mosaic.version = 11 : i64} {
  func.func @bn_relu_adder_stats_kernel(%arg0: i32, %arg1: i32, %arg2: memref<1x4x256xf32, #tpu.memory_space<vmem>>, %arg3: memref<4x1xf32, #tpu.memory_space<vmem>>, %arg4: memref<4x1xf32, #tpu.memory_space<vmem>>, %arg5: memref<4x4xf32, #tpu.memory_space<vmem>>, %arg6: memref<1x4x256xf32, #tpu.memory_space<vmem>>, %arg7: memref<4x2xf32, #tpu.memory_space<vmem>>) attributes {dimension_semantics = [#tpu.dimension_semantics<arbitrary>, #tpu.dimension_semantics<arbitrary>], iteration_bounds = array<i64: 2, 1>, scalar_prefetch = 0 : i64, scratch_operands = 0 : i64, tpu.core_type = #tpu.core_type<tc>, window_params = [{transform_indices = @transform_0, window_bounds = array<i64: 1, 4, 256>}, {pipeline_mode = #tpu.pipeline_mode<synchronous>, transform_indices = @transform_1, window_bounds = array<i64: 4, 1>}, {pipeline_mode = #tpu.pipeline_mode<synchronous>, transform_indices = @transform_2, window_bounds = array<i64: 4, 1>}, {pipeline_mode = #tpu.pipeline_mode<synchronous>, transform_indices = @transform_3, window_bounds = array<i64: 4, 4>}, {transform_indices = @transform_4, window_bounds = array<i64: 1, 4, 256>}, {pipeline_mode = #tpu.pipeline_mode<synchronous>, transform_indices = @transform_5, window_bounds = array<i64: 4, 2>}]} {
    %c0_i32 = arith.constant 0 : i32
    %0 = arith.cmpi eq, %arg0, %c0_i32 : i32
    %c0_i32_0 = arith.constant 0 : i32
    %1 = arith.cmpi eq, %arg1, %c0_i32_0 : i32
    %2 = arith.andi %0, %1 : i1
    %3 = arith.extui %2 : i1 to i32
    %c0_i32_1 = arith.constant 0 : i32
    %4 = arith.cmpi ne, %3, %c0_i32_1 : i32
    scf.if %4 {
      %cst_21 = arith.constant 0.000000e+00 : f32
      %59 = vector.broadcast %cst_21 : f32 to vector<4x2xf32>
      %c0_22 = arith.constant 0 : index
      %c0_23 = arith.constant 0 : index
      %60 = vector.load %arg7[%c0_22, %c0_23] : memref<4x2xf32, #tpu.memory_space<vmem>>, vector<4x2xf32>
      tpu.vector_store %arg7[%c0_22, %c0_23], %59 {strides = array<i32>} : memref<4x2xf32, #tpu.memory_space<vmem>>, vector<4x2xf32>,
    } else {
    }
    %c0 = arith.constant 0 : index
    %c0_2 = arith.constant 0 : index
    %c0_3 = arith.constant 0 : index
    %5 = vector.load %arg2[%c0, %c0_2, %c0_3] : memref<1x4x256xf32, #tpu.memory_space<vmem>>, vector<1x4x256xf32>
    %6 = vector.shape_cast %5 : vector<1x4x256xf32> to vector<4x256xf32>
    %c0_4 = arith.constant 0 : index
    %c0_5 = arith.constant 0 : index
    %7 = vector.load %arg3[%c0_4, %c0_5] : memref<4x1xf32, #tpu.memory_space<vmem>>, vector<4x1xf32>
    %8 = vector.broadcast %7 : vector<4x1xf32> to vector<4x256xf32>
    %9 = arith.mulf %6, %8 : vector<4x256xf32>
    %c0_6 = arith.constant 0 : index
    %c0_7 = arith.constant 0 : index
    %10 = vector.load %arg4[%c0_6, %c0_7] : memref<4x1xf32, #tpu.memory_space<vmem>>, vector<4x1xf32>
    %11 = vector.broadcast %10 : vector<4x1xf32> to vector<4x256xf32>
    %12 = arith.addf %9, %11 : vector<4x256xf32>
    %cst = arith.constant 0.000000e+00 : f32
    %13 = vector.broadcast %cst : f32 to vector<4x256xf32>
    %14 = arith.maximumf %12, %13 : vector<4x256xf32>
    %c0_8 = arith.constant 0 : index
    %c0_9 = arith.constant 0 : index
    %15 = vector.load %arg5[%c0_8, %c0_9] : memref<4x4xf32, #tpu.memory_space<vmem>>, vector<4x4xf32>
    %cst_10 = arith.constant 0.000000e+00 : f32
    %16 = vector.broadcast %cst_10 : f32 to vector<4x256xf32>
    %17 = vector.extract_strided_slice %14 {offsets = [0, 0], sizes = [1, 256], strides = [1, 1]} : vector<4x256xf32> to vector<1x256xf32>
    %18 = vector.extract_strided_slice %15 {offsets = [0, 0], sizes = [4, 1], strides = [1, 1]} : vector<4x4xf32> to vector<4x1xf32>
    %19 = vector.broadcast %17 : vector<1x256xf32> to vector<4x256xf32>
    %20 = vector.broadcast %18 : vector<4x1xf32> to vector<4x256xf32>
    %21 = arith.subf %19, %20 : vector<4x256xf32>
    %22 = math.absf %21 : vector<4x256xf32>
    %23 = arith.addf %16, %22 : vector<4x256xf32>
    %24 = vector.extract_strided_slice %14 {offsets = [1, 0], sizes = [1, 256], strides = [1, 1]} : vector<4x256xf32> to vector<1x256xf32>
    %25 = vector.extract_strided_slice %15 {offsets = [0, 1], sizes = [4, 1], strides = [1, 1]} : vector<4x4xf32> to vector<4x1xf32>
    %26 = vector.broadcast %24 : vector<1x256xf32> to vector<4x256xf32>
    %27 = vector.broadcast %25 : vector<4x1xf32> to vector<4x256xf32>
    %28 = arith.subf %26, %27 : vector<4x256xf32>
    %29 = math.absf %28 : vector<4x256xf32>
    %30 = arith.addf %23, %29 : vector<4x256xf32>
    %31 = vector.extract_strided_slice %14 {offsets = [2, 0], sizes = [1, 256], strides = [1, 1]} : vector<4x256xf32> to vector<1x256xf32>
    %32 = vector.extract_strided_slice %15 {offsets = [0, 2], sizes = [4, 1], strides = [1, 1]} : vector<4x4xf32> to vector<4x1xf32>
    %33 = vector.broadcast %31 : vector<1x256xf32> to vector<4x256xf32>
    %34 = vector.broadcast %32 : vector<4x1xf32> to vector<4x256xf32>
    %35 = arith.subf %33, %34 : vector<4x256xf32>
    %36 = math.absf %35 : vector<4x256xf32>
    %37 = arith.addf %30, %36 : vector<4x256xf32>
    %38 = vector.extract_strided_slice %14 {offsets = [3, 0], sizes = [1, 256], strides = [1, 1]} : vector<4x256xf32> to vector<1x256xf32>
    %39 = vector.extract_strided_slice %15 {offsets = [0, 3], sizes = [4, 1], strides = [1, 1]} : vector<4x4xf32> to vector<4x1xf32>
    %40 = vector.broadcast %38 : vector<1x256xf32> to vector<4x256xf32>
    %41 = vector.broadcast %39 : vector<4x1xf32> to vector<4x256xf32>
    %42 = arith.subf %40, %41 : vector<4x256xf32>
    %43 = math.absf %42 : vector<4x256xf32>
    %44 = arith.addf %37, %43 : vector<4x256xf32>
    %cst_11 = arith.constant 0.000000e+00 : f32
    %45 = vector.broadcast %cst_11 : f32 to vector<4x256xf32>
    %46 = arith.subf %45, %44 : vector<4x256xf32>
    %c0_12 = arith.constant 0 : index
    %c0_13 = arith.constant 0 : index
    %c0_14 = arith.constant 0 : index
    %47 = vector.load %arg6[%c0_12, %c0_13, %c0_14] : memref<1x4x256xf32, #tpu.memory_space<vmem>>, vector<1x4x256xf32>
    %48 = vector.shape_cast %47 : vector<1x4x256xf32> to vector<4x256xf32>
    %49 = vector.shape_cast %46 : vector<4x256xf32> to vector<1x4x256xf32>
    tpu.vector_store %arg6[%c0_12, %c0_13, %c0_14], %49 {strides = array<i32>} : memref<1x4x256xf32, #tpu.memory_space<vmem>>, vector<1x4x256xf32>,
    %cst_15 = arith.constant dense<0.000000e+00> : vector<4xf32>
    %50 = vector.multi_reduction <add>, %46, %cst_15 [1] : vector<4x256xf32> to vector<4xf32>
    %51 = vector.shape_cast %50 : vector<4xf32> to vector<4x1xf32>
    %52 = arith.mulf %46, %46 : vector<4x256xf32>
    %cst_16 = arith.constant dense<0.000000e+00> : vector<4xf32>
    %53 = vector.multi_reduction <add>, %52, %cst_16 [1] : vector<4x256xf32> to vector<4xf32>
    %54 = vector.shape_cast %53 : vector<4xf32> to vector<4x1xf32>
    %c0_17 = arith.constant 0 : index
    %c0_18 = arith.constant 0 : index
    %55 = vector.load %arg7[%c0_17, %c0_18] : memref<4x2xf32, #tpu.memory_space<vmem>>, vector<4x2xf32>
    %56 = tpu.concatenate %51, %54 in 1 : vector<4x1xf32>, vector<4x1xf32> -> vector<4x2xf32>
    %57 = arith.addf %55, %56 : vector<4x2xf32>
    %c0_19 = arith.constant 0 : index
    %c0_20 = arith.constant 0 : index
    %58 = vector.load %arg7[%c0_19, %c0_20] : memref<4x2xf32, #tpu.memory_space<vmem>>, vector<4x2xf32>
    tpu.vector_store %arg7[%c0_19, %c0_20], %57 {strides = array<i32>} : memref<4x2xf32, #tpu.memory_space<vmem>>, vector<4x2xf32>,
    return
  }
  func.func @transform_0(%arg0: i32, %arg1: i32) -> (i32, i32, i32) {
    %c0_i32 = arith.constant 0 : i32
    %c0_i32_0 = arith.constant 0 : i32
    return %arg0, %c0_i32, %arg1 : i32, i32, i32
  }
  func.func @transform_1(%arg0: i32, %arg1: i32) -> (i32, i32) {
    %c0_i32 = arith.constant 0 : i32
    %c0_i32_0 = arith.constant 0 : i32
    %c0_i32_1 = arith.constant 0 : i32
    return %c0_i32, %c0_i32_0 : i32, i32
  }
  func.func @transform_2(%arg0: i32, %arg1: i32) -> (i32, i32) {
    %c0_i32 = arith.constant 0 : i32
    %c0_i32_0 = arith.constant 0 : i32
    %c0_i32_1 = arith.constant 0 : i32
    return %c0_i32, %c0_i32_0 : i32, i32
  }
  func.func @transform_3(%arg0: i32, %arg1: i32) -> (i32, i32) {
    %c0_i32 = arith.constant 0 : i32
    %c0_i32_0 = arith.constant 0 : i32
    %c0_i32_1 = arith.constant 0 : i32
    return %c0_i32, %c0_i32_0 : i32, i32
  }
  func.func @transform_4(%arg0: i32, %arg1: i32) -> (i32, i32, i32) {
    %c0_i32 = arith.constant 0 : i32
    %c0_i32_0 = arith.constant 0 : i32
    return %arg0, %c0_i32, %arg1 : i32, i32, i32
  }
  func.func @transform_5(%arg0: i32, %arg1: i32) -> (i32, i32) {
    %c0_i32 = arith.constant 0 : i32
    %c0_i32_0 = arith.constant 0 : i32
    %c0_i32_1 = arith.constant 0 : i32
    return %c0_i32, %c0_i32_0 : i32, i32
  }
}

module attributes {stable_mosaic.version = 11 : i64} {
  func.func @bn_residual_relu_kernel(%arg0: i32, %arg1: i32, %arg2: memref<1x4x256xf32, #tpu.memory_space<vmem>>, %arg3: memref<4x1xf32, #tpu.memory_space<vmem>>, %arg4: memref<4x1xf32, #tpu.memory_space<vmem>>, %arg5: memref<1x4x256xf32, #tpu.memory_space<vmem>>, %arg6: memref<1x4x256xf32, #tpu.memory_space<vmem>>) attributes {dimension_semantics = [#tpu.dimension_semantics<parallel>, #tpu.dimension_semantics<parallel>], iteration_bounds = array<i64: 2, 1>, scalar_prefetch = 0 : i64, scratch_operands = 0 : i64, tpu.core_type = #tpu.core_type<tc>, window_params = [{transform_indices = @transform_0, window_bounds = array<i64: 1, 4, 256>}, {pipeline_mode = #tpu.pipeline_mode<synchronous>, transform_indices = @transform_1, window_bounds = array<i64: 4, 1>}, {pipeline_mode = #tpu.pipeline_mode<synchronous>, transform_indices = @transform_2, window_bounds = array<i64: 4, 1>}, {transform_indices = @transform_3, window_bounds = array<i64: 1, 4, 256>}, {transform_indices = @transform_4, window_bounds = array<i64: 1, 4, 256>}]} {
    %c0 = arith.constant 0 : index
    %c0_0 = arith.constant 0 : index
    %c0_1 = arith.constant 0 : index
    %0 = vector.load %arg2[%c0, %c0_0, %c0_1] : memref<1x4x256xf32, #tpu.memory_space<vmem>>, vector<1x4x256xf32>
    %1 = vector.shape_cast %0 : vector<1x4x256xf32> to vector<4x256xf32>
    %c0_2 = arith.constant 0 : index
    %c0_3 = arith.constant 0 : index
    %2 = vector.load %arg3[%c0_2, %c0_3] : memref<4x1xf32, #tpu.memory_space<vmem>>, vector<4x1xf32>
    %3 = vector.broadcast %2 : vector<4x1xf32> to vector<4x256xf32>
    %4 = arith.mulf %1, %3 : vector<4x256xf32>
    %c0_4 = arith.constant 0 : index
    %c0_5 = arith.constant 0 : index
    %5 = vector.load %arg4[%c0_4, %c0_5] : memref<4x1xf32, #tpu.memory_space<vmem>>, vector<4x1xf32>
    %6 = vector.broadcast %5 : vector<4x1xf32> to vector<4x256xf32>
    %7 = arith.addf %4, %6 : vector<4x256xf32>
    %c0_6 = arith.constant 0 : index
    %c0_7 = arith.constant 0 : index
    %c0_8 = arith.constant 0 : index
    %8 = vector.load %arg5[%c0_6, %c0_7, %c0_8] : memref<1x4x256xf32, #tpu.memory_space<vmem>>, vector<1x4x256xf32>
    %9 = vector.shape_cast %8 : vector<1x4x256xf32> to vector<4x256xf32>
    %10 = arith.addf %7, %9 : vector<4x256xf32>
    %cst = arith.constant 0.000000e+00 : f32
    %11 = vector.broadcast %cst : f32 to vector<4x256xf32>
    %12 = arith.maximumf %10, %11 : vector<4x256xf32>
    %c0_9 = arith.constant 0 : index
    %c0_10 = arith.constant 0 : index
    %c0_11 = arith.constant 0 : index
    %13 = vector.load %arg6[%c0_9, %c0_10, %c0_11] : memref<1x4x256xf32, #tpu.memory_space<vmem>>, vector<1x4x256xf32>
    %14 = vector.shape_cast %13 : vector<1x4x256xf32> to vector<4x256xf32>
    %15 = vector.shape_cast %12 : vector<4x256xf32> to vector<1x4x256xf32>
    tpu.vector_store %arg6[%c0_9, %c0_10, %c0_11], %15 {strides = array<i32>} : memref<1x4x256xf32, #tpu.memory_space<vmem>>, vector<1x4x256xf32>,
    return
  }
  func.func @transform_0(%arg0: i32, %arg1: i32) -> (i32, i32, i32) {
    %c0_i32 = arith.constant 0 : i32
    %c0_i32_0 = arith.constant 0 : i32
    return %arg0, %c0_i32, %arg1 : i32, i32, i32
  }
  func.func @transform_1(%arg0: i32, %arg1: i32) -> (i32, i32) {
    %c0_i32 = arith.constant 0 : i32
    %c0_i32_0 = arith.constant 0 : i32
    %c0_i32_1 = arith.constant 0 : i32
    return %c0_i32, %c0_i32_0 : i32, i32
  }
  func.func @transform_2(%arg0: i32, %arg1: i32) -> (i32, i32) {
    %c0_i32 = arith.constant 0 : i32
    %c0_i32_0 = arith.constant 0 : i32
    %c0_i32_1 = arith.constant 0 : i32
    return %c0_i32, %c0_i32_0 : i32, i32
  }
  func.func @transform_3(%arg0: i32, %arg1: i32) -> (i32, i32, i32) {
    %c0_i32 = arith.constant 0 : i32
    %c0_i32_0 = arith.constant 0 : i32
    return %arg0, %c0_i32, %arg1 : i32, i32, i32
  }
  func.func @transform_4(%arg0: i32, %arg1: i32) -> (i32, i32, i32) {
    %c0_i32 = arith.constant 0 : i32
    %c0_i32_0 = arith.constant 0 : i32
    return %arg0, %c0_i32, %arg1 : i32, i32, i32
  }
}

</mosaic_0001>

<llo_original>
// kernel: resblock_forward.3
$region0: #{resblock_forward.3}
  #allocation0 [shape = 'u32[]', space=smem, size = 0x4, offset = 0x4, fixed_abs, tag = 'smem constant byte address 0x4 - core index']
  #allocation1 [shape = 'u32[144,128]{1,0:T(1,128)}', space=vmem, size = 0x12000, scoped, tag = 'internal scratch']
  %s0 = inlined_call_operand.vmem [shape: f32[2,4,256], index: 0, kind: input, shape index: {}]
  %s1 = inlined_call_operand.vmem [shape: f32[4,4], index: 1, kind: input, shape index: {}]
  %s2 = inlined_call_operand.vmem [shape: f32[2,4,256], index: 2, kind: output, shape index: {0}]
  %s3 = inlined_call_operand.vmem [shape: f32[4,2], index: 3, kind: output, shape index: {1}]
  %4 = xla_tuple %s2, %s3
  %s5 = sld [smem:[#allocation0]]
  $region53: #{resblock_forward.3} parent=0
    _
  %s7 = ssub.s32 1, %s5
  %s8 = scalar_select 0, %s7, %s5
  loop: start=0, step=1, limit=4
  $region2: #{resblock_forward.3} parent=0 // loop_pre_header
    _
  $region3: #{resblock_forward.3} parent=0 // loop_header
    %s10 = sphi 0, %s14
    %p11 = scmp.ge.s32.totalorder %s10, 4
    %s17 = sphi 0, %s29
    %s18 = sphi 0, %s25
    %s19 = sphi 0, %s17
    %s20 = sphi 0, %s18
    %s21 = sphi 0, %s19
    %s22 = sphi 0, %s20
    %s34 = sphi 0, %s36
    %s37 = sphi 0, %s34
    %s38 = sphi 0, %s37
    %s54 = sphi 0, %s38
    %s58 = sphi 0, %s58
    %s60 = sphi 0, %s58
    %s61 = sphi 0, %s60
    %s75 = sphi 0, %s61
    %s83 = sphi 0, %s85
    %s86 = sphi 0, %s83
    %s87 = sphi 0, %s86
    %s103 = sphi 0, %s87
    %s107 = sphi 0, %s107
    %s109 = sphi 0, %s107
    %s110 = sphi 0, %s109
    %s124 = sphi 0, %s110
  $region4: #{resblock_forward.3} parent=0 // loop_header_branch
    %13 = sbr.rel (%p11) target = $region8
  $region5: #{resblock_forward.3} parent=0 // loop_body
    %s15 = ssub.s32 %s10, 1
    %s16 = ssub.s32 %s10, 2
    %s23 = sadd.s32 1, %s18
    %p24 = scmp.ge.s32.totalorder %s23, 1
    %s25 = scalar_select %p24, 0, %s23
    %s26 = sadd.s32 1, %s17
    %s27 = scalar_select %p24, %s26, %s17
    %p28 = scmp.ge.s32.totalorder %s27, 2
    %s29 = scalar_select %p28, 0, %s27
    %s30 = ssub.s32 %s17, %s29
    %s31 = ssub.s32 %s18, %s25
    %s32 = sor.u32 %s30, %s31
    %p33 = scmp.eq.s32.totalorder %s32, 0
    %s35 = sadd.s32 %s34, 1
    %s36 = scalar_select %p33, %s34, %s35
    %p39 = pneg %p33
    %p40 = scmp.eq.s32.totalorder %s10, 1
    %p41 = por %p39, %p40
    %p42 = scmp.ne.s32.totalorder %s34, %s37
    %p43 = scmp.eq.s32.totalorder %s10, 0
    %p44 = por %p42, %p43
    %p45 = scmp.ne.s32.totalorder %s34, %s37
    %p46 = scmp.eq.s32.totalorder %s15, 1
    %p47 = por %p45, %p46
    %p48 = scmp.ne.s32.totalorder %s37, %s38
    %p49 = scmp.eq.s32.totalorder %s15, 0
    %p50 = por %p48, %p49
    %p51 = scmp.ne.s32.totalorder %s37, %s38
    %p52 = scmp.eq.s32.totalorder %s16, 1
    %p53 = por %p51, %p52
    %p55 = scmp.ne.s32.totalorder %s38, %s54
    %p56 = scmp.eq.s32.totalorder %s16, 0
    %p57 = por %p55, %p56
    %s59 = sadd.s32 %s58, 1
    %p62 = scmp.eq.s32.totalorder %s10, 1
    %p63 = scmp.ne.s32.totalorder %s58, %s60
    %p64 = scmp.eq.s32.totalorder %s10, 0
    %p65 = por %p63, %p64
    %p66 = scmp.ne.s32.totalorder %s58, %s60
    %p67 = scmp.eq.s32.totalorder %s15, 1
    %p68 = por %p66, %p67
    %p69 = scmp.ne.s32.totalorder %s60, %s61
    %p70 = scmp.eq.s32.totalorder %s15, 0
    %p71 = por %p69, %p70
    %p72 = scmp.ne.s32.totalorder %s60, %s61
    %p73 = scmp.eq.s32.totalorder %s16, 1
    %p74 = por %p72, %p73
    %p76 = scmp.ne.s32.totalorder %s61, %s75
    %p77 = scmp.eq.s32.totalorder %s16, 0
    %p78 = por %p76, %p77
    %s79 = ssub.s32 %s17, %s29
    %s80 = ssub.s32 %s18, %s25
    %s81 = sor.u32 %s79, %s80
    %p82 = scmp.eq.s32.totalorder %s81, 0
    %s84 = sadd.s32 %s83, 1
    %s85 = scalar_select %p82, %s83, %s84
    %p88 = pneg %p82
    %p89 = scmp.eq.s32.totalorder %s10, 1
    %p90 = por %p88, %p89
    %p91 = scmp.ne.s32.totalorder %s83, %s86
    %p92 = scmp.eq.s32.totalorder %s10, 0
    %p93 = por %p91, %p92
    %p94 = scmp.ne.s32.totalorder %s83, %s86
    %p95 = scmp.eq.s32.totalorder %s15, 1
    %p96 = por %p94, %p95
    %p97 = scmp.ne.s32.totalorder %s86, %s87
    %p98 = scmp.eq.s32.totalorder %s15, 0
    %p99 = por %p97, %p98
    %p100 = scmp.ne.s32.totalorder %s86, %s87
    %p101 = scmp.eq.s32.totalorder %s16, 1
    %p102 = por %p100, %p101
    %p104 = scmp.ne.s32.totalorder %s87, %s103
    %p105 = scmp.eq.s32.totalorder %s16, 0
    %p106 = por %p104, %p105
    %s108 = sadd.s32 %s107, 1
    %p111 = scmp.eq.s32.totalorder %s10, 1
    %p112 = scmp.ne.s32.totalorder %s107, %s109
    %p113 = scmp.eq.s32.totalorder %s10, 0
    %p114 = por %p112, %p113
    %p115 = scmp.ne.s32.totalorder %s107, %s109
    %p116 = scmp.eq.s32.totalorder %s15, 1
    %p117 = por %p115, %p116
    %p118 = scmp.ne.s32.totalorder %s109, %s110
    %p119 = scmp.eq.s32.totalorder %s15, 0
    %p120 = por %p118, %p119
    %p121 = scmp.ne.s32.totalorder %s109, %s110
    %p122 = scmp.eq.s32.totalorder %s16, 1
    %p123 = por %p121, %p122
    %p125 = scmp.ne.s32.totalorder %s110, %s124
    %p126 = scmp.eq.s32.totalorder %s16, 0
    %p127 = por %p125, %p126
    %p128 = scmp.le.s32.totalorder 1, %s10
    %p129 = scmp.lt.s32.totalorder %s10, 3
    %p130 = pnand %p128, %p129
    %p131 = pneg %p130
    // Predicated region
    $region9: #{resblock_forward.3} parent=5 // pred_check
      _
    $region10: #{resblock_forward.3} parent=5 // pred_check_branch
      %133 = sbr.rel (%p130) target = $region12
    $region11: #{resblock_forward.3} parent=5 // pred_region
      %s134 = ssub.s32 %s10, 1
      // Predicated region
      $region13: #{resblock_forward.3} parent=11 // pred_check
        %p135 = pneg %p71
      $region14: #{resblock_forward.3} parent=11 // pred_check_branch
        %137 = sbr.rel (%p135) target = $region16
      $region15: #{resblock_forward.3} parent=11 // pred_region
        _
      $region16: #{resblock_forward.3} parent=11 // pred_fallthru
        _
    $region12: #{resblock_forward.3} parent=5 // pred_fallthru
      _
    %p138 = scmp.lt.s32.totalorder %s10, 2
    // Predicated region
    $region17: #{resblock_forward.3} parent=5 // pred_check
      %p139 = pneg %p138
    $region18: #{resblock_forward.3} parent=5 // pred_check_branch
      %141 = sbr.rel (%p139) target = $region20
    $region19: #{resblock_forward.3} parent=5 // pred_region
      // Predicated region
      $region21: #{resblock_forward.3} parent=19 // pred_check
        %p142 = pneg %p44
      $region22: #{resblock_forward.3} parent=19 // pred_check_branch
        %144 = sbr.rel (%p142) target = $region24
      $region23: #{resblock_forward.3} parent=19 // pred_region
        %s145 = smul.u32 2, %s18
        %p146 = scmp.lt.s32.totalorder %s17, 1
        %s147 = scalar_select %p146, %s17, 1
        %p148 = scmp.lt.s32.totalorder %s145, 1
        %s149 = scalar_select %p148, %s145, 1
        %s150 = smul.addr %s147, 2
        %s151 = sadd.s32 %s149, %s150
        %s152 = smul.addr %s151, 4
        %s153 = scalar_lea.vmem %s0, %s152
        %s154 = smul.u32 2, %s18
      $region24: #{resblock_forward.3} parent=19 // pred_fallthru
        _
    $region20: #{resblock_forward.3} parent=5 // pred_fallthru
      _
    %p155 = scmp.le.s32.totalorder 1, %s10
    %p156 = scmp.lt.s32.totalorder %s10, 3
    %p157 = pnand %p155, %p156
    %p158 = pneg %p157
    // Predicated region
    $region25: #{resblock_forward.3} parent=5 // pred_check
      _
    $region26: #{resblock_forward.3} parent=5 // pred_check_branch
      %160 = sbr.rel (%p157) target = $region28
    $region27: #{resblock_forward.3} parent=5 // pred_region
      %s161 = ssub.s32 %s10, 1
      %s162 = smul.u32 2, %s20
      %p163 = scmp.lt.s32.totalorder %s19, 1
      %s164 = scalar_select %p163, %s19, 1
      %p165 = scmp.lt.s32.totalorder %s162, 1
      %s166 = scalar_select %p165, %s162, 1
      %s167 = smul.addr %s164, 2
      %s168 = sadd.s32 %s166, %s167
      %s169 = smul.addr %s168, 4
      %s170 = scalar_lea.vmem %s0, %s169
      %p171 = pneg %p50
      %p172 = pneg %p47
      %p173 = pneg %p71
      %p174 = pneg %p68
      %p175 = pneg %p99
      %p176 = pneg %p96
      %s177 = smul.u32 2, %s20
      %p178 = scmp.lt.s32.totalorder %s19, 1
      %s179 = scalar_select %p178, %s19, 1
      %p180 = scmp.lt.s32.totalorder %s177, 1
      %s181 = scalar_select %p180, %s177, 1
      %s182 = smul.addr %s179, 2
      %s183 = sadd.s32 %s181, %s182
      %s184 = smul.addr %s183, 4
      %s185 = scalar_lea.vmem %s2, %s184
      %p186 = pneg %p120
      %p187 = pneg %p117
      %s188 = smul.u32 2, %s20
      %p189 = scmp.lt.s32.totalorder %s19, 1
      %s190 = scalar_select %p189, %s19, 1
      %p191 = scmp.lt.s32.totalorder %s188, 1
      %s192 = scalar_select %p191, %s188, 1
      %s193 = smul.addr %s190, 2
      %s194 = sadd.s32 %s192, %s193
      %s195 = smul.addr %s194, 4
      %s196 = scalar_lea.vmem %s0, %s195
      %s197 = smul.u32 2, %s20
      %s198 = smul.u32 2, %s20
      %p199 = scmp.lt.s32.totalorder %s19, 1
      %s200 = scalar_select %p199, %s19, 1
      %p201 = scmp.lt.s32.totalorder %s198, 1
      %s202 = scalar_select %p201, %s198, 1
      %s203 = smul.addr %s200, 2
      %s204 = sadd.s32 %s202, %s203
      %s205 = smul.addr %s204, 4
      %s206 = scalar_lea.vmem %s2, %s205
      %s207 = smul.u32 2, %s20
      %p208 = scmp.eq.s32.totalorder %s19, 0
      %p209 = scmp.eq.s32.totalorder %s20, 0
      %p210 = pnand %p208, %p209
      %p211 = pneg %p210
      // Predicated region
      $region29: #{resblock_forward.3} parent=27 // pred_check
        _
      $region30: #{resblock_forward.3} parent=27 // pred_check_branch
        %213 = sbr.rel (%p210) target = $region32
      $region31: #{resblock_forward.3} parent=27 // pred_region
        %vm214 = vcmask 11264
        %215 = vst.msk [vmem:[%s3] sm:$0xf] %vm214, 0.0
      $region32: #{resblock_forward.3} parent=27 // pred_fallthru
        _
      %v216 = vld [vmem:[%s196] sm:$0xff]
      %v217 = vld [vmem:[%s1] sm:$0xf]
      %v219 = vlaneseq
      %v220 = vshrl.u32 %v219, 7
      %v221 = vsub.s32 0, %v220
      %v222 = vrot.slane %v216, %v221
      %v223 = vlaneseq
      %v224 = vshrl.u32 %v223, 7
      %v225 = vsub.s32 4, %v224
      %v226 = vrot.slane %v216, %v225
      %v229 = vlaneseq
      %v230 = vshrl.u32 %v229, 7
      %v231 = vsub.s32 0, %v230
      %v232 = vrot.slane %v222, %v231
      %v233 = vlaneseq
      %v234 = vshrl.u32 %v233, 7
      %v235 = vsub.s32 0, %v234
      %v236 = vrot.slane %v226, %v235
      %238 = vset.pattern.permute.xlu0 0
      %239 = vperm.xlu0 %238, %v217
      %v240 = vpop.permute.xlu0 %239
      %v242 = vsub.f32 %v232, %v240
      %v243 = vsub.f32 %v236, %v240
      %v244 = vand.u32 2147483647, %v242
      %v245 = vand.u32 2147483647, %v243
      %v246 = vadd.f32 %v244, 0.0
      %v247 = vadd.f32 %v245, 0.0
      %v248 = vlaneseq
      %v249 = vshrl.u32 %v248, 7
      %v250 = vsub.s32 1, %v249
      %v251 = vrot.slane %v216, %v250
      %v252 = vlaneseq
      %v253 = vshrl.u32 %v252, 7
      %v254 = vsub.s32 5, %v253
      %v255 = vrot.slane %v216, %v254
      %v258 = vlaneseq
      %v259 = vshrl.u32 %v258, 7
      %v260 = vsub.s32 1, %v259
      %v261 = vrot.slane %v251, %v260
      %v262 = vlaneseq
      %v263 = vshrl.u32 %v262, 7
      %v264 = vsub.s32 1, %v263
      %v265 = vrot.slane %v255, %v264
      %266 = vset.pattern.permute.xlu0 1
      %267 = vperm.xlu0 %266, %v217
      %v268 = vpop.permute.xlu0 %267
      %v270 = vsub.f32 %v261, %v268
      %v271 = vsub.f32 %v265, %v268
      %v272 = vand.u32 2147483647, %v270
      %v273 = vand.u32 2147483647, %v271
      %v274 = vadd.f32 %v246, %v272
      %v275 = vadd.f32 %v247, %v273
      %v276 = vlaneseq
      %v277 = vshrl.u32 %v276, 7
      %v278 = vsub.s32 2, %v277
      %v279 = vrot.slane %v216, %v278
      %v280 = vlaneseq
      %v281 = vshrl.u32 %v280, 7
      %v282 = vsub.s32 6, %v281
      %v283 = vrot.slane %v216, %v282
      %v286 = vlaneseq
      %v287 = vshrl.u32 %v286, 7
      %v288 = vsub.s32 2, %v287
      %v289 = vrot.slane %v279, %v288
      %v290 = vlaneseq
      %v291 = vshrl.u32 %v290, 7
      %v292 = vsub.s32 2, %v291
      %v293 = vrot.slane %v283, %v292
      %294 = vset.pattern.permute.xlu0 2
      %295 = vperm.xlu0 %294, %v217
      %v296 = vpop.permute.xlu0 %295
      %v298 = vsub.f32 %v289, %v296
      %v299 = vsub.f32 %v293, %v296
      %v300 = vand.u32 2147483647, %v298
      %v301 = vand.u32 2147483647, %v299
      %v302 = vadd.f32 %v274, %v300
      %v303 = vadd.f32 %v275, %v301
      %v304 = vlaneseq
      %v305 = vshrl.u32 %v304, 7
      %v306 = vsub.s32 3, %v305
      %v307 = vrot.slane %v216, %v306
      %v308 = vlaneseq
      %v309 = vshrl.u32 %v308, 7
      %v310 = vsub.s32 7, %v309
      %v311 = vrot.slane %v216, %v310
      %v314 = vlaneseq
      %v315 = vshrl.u32 %v314, 7
      %v316 = vsub.s32 3, %v315
      %v317 = vrot.slane %v307, %v316
      %v318 = vlaneseq
      %v319 = vshrl.u32 %v318, 7
      %v320 = vsub.s32 3, %v319
      %v321 = vrot.slane %v311, %v320
      %322 = vset.pattern.permute.xlu0 3
      %323 = vperm.xlu0 %322, %v217
      %v324 = vpop.permute.xlu0 %323
      %v326 = vsub.f32 %v317, %v324
      %v327 = vsub.f32 %v321, %v324
      %v328 = vand.u32 2147483647, %v326
      %v329 = vand.u32 2147483647, %v327
      %v330 = vadd.f32 %v302, %v328
      %v331 = vadd.f32 %v303, %v329
      %v332 = vsub.f32 0.0, %v330
      %v333 = vsub.f32 0.0, %v331
      %v336 = vcombine.low %v332, %v333
      %338 = vst [vmem:[%s206] sm:$0xff] %v336
      %vm339 = vcmask 1043456
      %v340 = vsel %vm339, %v332, 0.0
      %v341 = vsel %vm339, %v333, 0.0
      %v342 = vadd.f32 %v340, %v341
      %343 = vadd.xlane.f32.xlu0 %v342
      %v344 = vpop.xlane.xlu0 %343
      %v345 = vmul.f32 %v332, %v332
      %v346 = vmul.f32 %v333, %v333
      %v347 = vsel %vm339, %v345, 0.0
      %v348 = vsel %vm339, %v346, 0.0
      %v349 = vadd.f32 %v347, %v348
      %350 = vadd.xlane.f32.xlu0 %v349
      %v351 = vpop.xlane.xlu0 %350
      %v352 = vld [vmem:[%s3] sm:$0xf]
      %vm353 = vcmask 7168
      %v354 = vsel %vm353, %v344, %v351
      %v355 = vadd.f32 %v352, %v354
      %vm356 = vcmask 11264
      %357 = vst.msk [vmem:[%s3] sm:$0xf] %vm356, %v355
      %s358 = smul.u32 2, %s20
      %p359 = scmp.lt.s32.totalorder %s19, 1
      %s360 = scalar_select %p359, %s19, 1
      %p361 = scmp.lt.s32.totalorder %s358, 1
      %s362 = scalar_select %p361, %s358, 1
      %s363 = smul.addr %s360, 2
      %s364 = sadd.s32 %s362, %s363
      %s365 = smul.addr %s364, 4
      %s366 = scalar_lea.vmem %s2, %s365
      // Predicated region
      $region33: #{resblock_forward.3} parent=27 // pred_check
        %p367 = pneg %p96
      $region34: #{resblock_forward.3} parent=27 // pred_check_branch
        %369 = sbr.rel (%p367) target = $region36
      $region35: #{resblock_forward.3} parent=27 // pred_region
        %s370 = smul.u32 2, %s20
      $region36: #{resblock_forward.3} parent=27 // pred_fallthru
        _
      // Predicated region
      $region37: #{resblock_forward.3} parent=27 // pred_check
        %p371 = pneg %p117
      $region38: #{resblock_forward.3} parent=27 // pred_check_branch
        %373 = sbr.rel (%p371) target = $region40
      $region39: #{resblock_forward.3} parent=27 // pred_region
        _
      $region40: #{resblock_forward.3} parent=27 // pred_fallthru
        _
      // Predicated region
      $region41: #{resblock_forward.3} parent=27 // pred_check
        %p374 = pneg %p117
      $region42: #{resblock_forward.3} parent=27 // pred_check_branch
        %376 = sbr.rel (%p374) target = $region44
      $region43: #{resblock_forward.3} parent=27 // pred_region
        _
      $region44: #{resblock_forward.3} parent=27 // pred_fallthru
        _
    $region28: #{resblock_forward.3} parent=5 // pred_fallthru
      _
    %p377 = scmp.le.s32.totalorder 2, %s10
    // Predicated region
    $region45: #{resblock_forward.3} parent=5 // pred_check
      %p378 = pneg %p377
    $region46: #{resblock_forward.3} parent=5 // pred_check_branch
      %380 = sbr.rel (%p378) target = $region48
    $region47: #{resblock_forward.3} parent=5 // pred_region
      %s381 = ssub.s32 %s10, 2
      // Predicated region
      $region49: #{resblock_forward.3} parent=47 // pred_check
        %p382 = pneg %p102
      $region50: #{resblock_forward.3} parent=47 // pred_check_branch
        %384 = sbr.rel (%p382) target = $region52
      $region51: #{resblock_forward.3} parent=47 // pred_region
        %s385 = smul.u32 2, %s22
        %p386 = scmp.lt.s32.totalorder %s21, 1
        %s387 = scalar_select %p386, %s21, 1
        %p388 = scmp.lt.s32.totalorder %s385, 1
        %s389 = scalar_select %p388, %s385, 1
        %s390 = smul.addr %s387, 2
        %s391 = sadd.s32 %s389, %s390
        %s392 = smul.addr %s391, 4
        %s393 = scalar_lea.vmem %s2, %s392
      $region52: #{resblock_forward.3} parent=47 // pred_fallthru
        _
    $region48: #{resblock_forward.3} parent=5 // pred_fallthru
      _
  $region6: #{resblock_forward.3} parent=0 // loop_footer
    %s14 = sadd.s32 1, %s10
  $region7: #{resblock_forward.3} parent=0 // loop_footer_branch
    %9 = sbr.rel target = $region3
  $region8: #{resblock_forward.3} parent=0 // loop_exit
    _

// kernel: resblock_forward.5
$region0: #{resblock_forward.5}
  #allocation0 [shape = 'u32[]', space=smem, size = 0x4, offset = 0x4, fixed_abs, tag = 'smem constant byte address 0x4 - core index']
  #allocation1 [shape = 'u32[144,128]{1,0:T(1,128)}', space=vmem, size = 0x12000, scoped, tag = 'internal scratch']
  %s0 = inlined_call_operand.vmem [shape: f32[2,4,256], index: 0, kind: input, shape index: {}]
  %s1 = inlined_call_operand.vmem [shape: f32[4,1], index: 1, kind: input, shape index: {}]
  %s2 = inlined_call_operand.vmem [shape: f32[4,1], index: 2, kind: input, shape index: {}]
  %s3 = inlined_call_operand.vmem [shape: f32[2,4,256], index: 3, kind: input, shape index: {}]
  %s4 = inlined_call_operand.vmem [shape: f32[2,4,256], index: 4, kind: output, shape index: {}]
  %s5 = sld [smem:[#allocation0]]
  $region49: #{resblock_forward.5} parent=0
    _
  %s7 = ssub.s32 1, %s5
  %s8 = scalar_select 0, %s7, %s5
  loop: start=0, step=1, limit=4
  $region2: #{resblock_forward.5} parent=0 // loop_pre_header
    _
  $region3: #{resblock_forward.5} parent=0 // loop_header
    %s10 = sphi 0, %s14
    %p11 = scmp.ge.s32.totalorder %s10, 4
    %s17 = sphi 0, %s29
    %s18 = sphi 0, %s25
    %s19 = sphi 0, %s17
    %s20 = sphi 0, %s18
    %s21 = sphi 0, %s19
    %s22 = sphi 0, %s20
    %s34 = sphi 0, %s36
    %s37 = sphi 0, %s34
    %s38 = sphi 0, %s37
    %s54 = sphi 0, %s38
    %s58 = sphi 0, %s58
    %s60 = sphi 0, %s58
    %s61 = sphi 0, %s60
    %s75 = sphi 0, %s61
    %s79 = sphi 0, %s79
    %s81 = sphi 0, %s79
    %s82 = sphi 0, %s81
    %s96 = sphi 0, %s82
    %s104 = sphi 0, %s106
    %s107 = sphi 0, %s104
    %s108 = sphi 0, %s107
    %s124 = sphi 0, %s108
    %s132 = sphi 0, %s134
    %s135 = sphi 0, %s132
    %s136 = sphi 0, %s135
    %s152 = sphi 0, %s136
  $region4: #{resblock_forward.5} parent=0 // loop_header_branch
    %13 = sbr.rel (%p11) target = $region8
  $region5: #{resblock_forward.5} parent=0 // loop_body
    %s15 = ssub.s32 %s10, 1
    %s16 = ssub.s32 %s10, 2
    %s23 = sadd.s32 1, %s18
    %p24 = scmp.ge.s32.totalorder %s23, 1
    %s25 = scalar_select %p24, 0, %s23
    %s26 = sadd.s32 1, %s17
    %s27 = scalar_select %p24, %s26, %s17
    %p28 = scmp.ge.s32.totalorder %s27, 2
    %s29 = scalar_select %p28, 0, %s27
    %s30 = ssub.s32 %s17, %s29
    %s31 = ssub.s32 %s18, %s25
    %s32 = sor.u32 %s30, %s31
    %p33 = scmp.eq.s32.totalorder %s32, 0
    %s35 = sadd.s32 %s34, 1
    %s36 = scalar_select %p33, %s34, %s35
    %p39 = pneg %p33
    %p40 = scmp.eq.s32.totalorder %s10, 1
    %p41 = por %p39, %p40
    %p42 = scmp.ne.s32.totalorder %s34, %s37
    %p43 = scmp.eq.s32.totalorder %s10, 0
    %p44 = por %p42, %p43
    %p45 = scmp.ne.s32.totalorder %s34, %s37
    %p46 = scmp.eq.s32.totalorder %s15, 1
    %p47 = por %p45, %p46
    %p48 = scmp.ne.s32.totalorder %s37, %s38
    %p49 = scmp.eq.s32.totalorder %s15, 0
    %p50 = por %p48, %p49
    %p51 = scmp.ne.s32.totalorder %s37, %s38
    %p52 = scmp.eq.s32.totalorder %s16, 1
    %p53 = por %p51, %p52
    %p55 = scmp.ne.s32.totalorder %s38, %s54
    %p56 = scmp.eq.s32.totalorder %s16, 0
    %p57 = por %p55, %p56
    %s59 = sadd.s32 %s58, 1
    %p62 = scmp.eq.s32.totalorder %s10, 1
    %p63 = scmp.ne.s32.totalorder %s58, %s60
    %p64 = scmp.eq.s32.totalorder %s10, 0
    %p65 = por %p63, %p64
    %p66 = scmp.ne.s32.totalorder %s58, %s60
    %p67 = scmp.eq.s32.totalorder %s15, 1
    %p68 = por %p66, %p67
    %p69 = scmp.ne.s32.totalorder %s60, %s61
    %p70 = scmp.eq.s32.totalorder %s15, 0
    %p71 = por %p69, %p70
    %p72 = scmp.ne.s32.totalorder %s60, %s61
    %p73 = scmp.eq.s32.totalorder %s16, 1
    %p74 = por %p72, %p73
    %p76 = scmp.ne.s32.totalorder %s61, %s75
    %p77 = scmp.eq.s32.totalorder %s16, 0
    %p78 = por %p76, %p77
    %s80 = sadd.s32 %s79, 1
    %p83 = scmp.eq.s32.totalorder %s10, 1
    %p84 = scmp.ne.s32.totalorder %s79, %s81
    %p85 = scmp.eq.s32.totalorder %s10, 0
    %p86 = por %p84, %p85
    %p87 = scmp.ne.s32.totalorder %s79, %s81
    %p88 = scmp.eq.s32.totalorder %s15, 1
    %p89 = por %p87, %p88
    %p90 = scmp.ne.s32.totalorder %s81, %s82
    %p91 = scmp.eq.s32.totalorder %s15, 0
    %p92 = por %p90, %p91
    %p93 = scmp.ne.s32.totalorder %s81, %s82
    %p94 = scmp.eq.s32.totalorder %s16, 1
    %p95 = por %p93, %p94
    %p97 = scmp.ne.s32.totalorder %s82, %s96
    %p98 = scmp.eq.s32.totalorder %s16, 0
    %p99 = por %p97, %p98
    %s100 = ssub.s32 %s17, %s29
    %s101 = ssub.s32 %s18, %s25
    %s102 = sor.u32 %s100, %s101
    %p103 = scmp.eq.s32.totalorder %s102, 0
    %s105 = sadd.s32 %s104, 1
    %s106 = scalar_select %p103, %s104, %s105
    %p109 = pneg %p103
    %p110 = scmp.eq.s32.totalorder %s10, 1
    %p111 = por %p109, %p110
    %p112 = scmp.ne.s32.totalorder %s104, %s107
    %p113 = scmp.eq.s32.totalorder %s10, 0
    %p114 = por %p112, %p113
    %p115 = scmp.ne.s32.totalorder %s104, %s107
    %p116 = scmp.eq.s32.totalorder %s15, 1
    %p117 = por %p115, %p116
    %p118 = scmp.ne.s32.totalorder %s107, %s108
    %p119 = scmp.eq.s32.totalorder %s15, 0
    %p120 = por %p118, %p119
    %p121 = scmp.ne.s32.totalorder %s107, %s108
    %p122 = scmp.eq.s32.totalorder %s16, 1
    %p123 = por %p121, %p122
    %p125 = scmp.ne.s32.totalorder %s108, %s124
    %p126 = scmp.eq.s32.totalorder %s16, 0
    %p127 = por %p125, %p126
    %s128 = ssub.s32 %s17, %s29
    %s129 = ssub.s32 %s18, %s25
    %s130 = sor.u32 %s128, %s129
    %p131 = scmp.eq.s32.totalorder %s130, 0
    %s133 = sadd.s32 %s132, 1
    %s134 = scalar_select %p131, %s132, %s133
    %p137 = pneg %p131
    %p138 = scmp.eq.s32.totalorder %s10, 1
    %p139 = por %p137, %p138
    %p140 = scmp.ne.s32.totalorder %s132, %s135
    %p141 = scmp.eq.s32.totalorder %s10, 0
    %p142 = por %p140, %p141
    %p143 = scmp.ne.s32.totalorder %s132, %s135
    %p144 = scmp.eq.s32.totalorder %s15, 1
    %p145 = por %p143, %p144
    %p146 = scmp.ne.s32.totalorder %s135, %s136
    %p147 = scmp.eq.s32.totalorder %s15, 0
    %p148 = por %p146, %p147
    %p149 = scmp.ne.s32.totalorder %s135, %s136
    %p150 = scmp.eq.s32.totalorder %s16, 1
    %p151 = por %p149, %p150
    %p153 = scmp.ne.s32.totalorder %s136, %s152
    %p154 = scmp.eq.s32.totalorder %s16, 0
    %p155 = por %p153, %p154
    %p156 = scmp.le.s32.totalorder 1, %s10
    %p157 = scmp.lt.s32.totalorder %s10, 3
    %p158 = pnand %p156, %p157
    %p159 = pneg %p158
    // Predicated region
    $region9: #{resblock_forward.5} parent=5 // pred_check
      _
    $region10: #{resblock_forward.5} parent=5 // pred_check_branch
      %161 = sbr.rel (%p158) target = $region12
    $region11: #{resblock_forward.5} parent=5 // pred_region
      %s162 = ssub.s32 %s10, 1
      // Predicated region
      $region13: #{resblock_forward.5} parent=11 // pred_check
        %p163 = pneg %p71
      $region14: #{resblock_forward.5} parent=11 // pred_check_branch
        %165 = sbr.rel (%p163) target = $region16
      $region15: #{resblock_forward.5} parent=11 // pred_region
        _
      $region16: #{resblock_forward.5} parent=11 // pred_fallthru
        _
      // Predicated region
      $region17: #{resblock_forward.5} parent=11 // pred_check
        %p166 = pneg %p92
      $region18: #{resblock_forward.5} parent=11 // pred_check_branch
        %168 = sbr.rel (%p166) target = $region20
      $region19: #{resblock_forward.5} parent=11 // pred_region
        _
      $region20: #{resblock_forward.5} parent=11 // pred_fallthru
        _
    $region12: #{resblock_forward.5} parent=5 // pred_fallthru
      _
    %p169 = scmp.lt.s32.totalorder %s10, 2
    // Predicated region
    $region21: #{resblock_forward.5} parent=5 // pred_check
      %p170 = pneg %p169
    $region22: #{resblock_forward.5} parent=5 // pred_check_branch
      %172 = sbr.rel (%p170) target = $region24
    $region23: #{resblock_forward.5} parent=5 // pred_region
      // Predicated region
      $region25: #{resblock_forward.5} parent=23 // pred_check
        %p173 = pneg %p44
      $region26: #{resblock_forward.5} parent=23 // pred_check_branch
        %175 = sbr.rel (%p173) target = $region28
      $region27: #{resblock_forward.5} parent=23 // pred_region
        %s176 = smul.u32 2, %s18
        %p177 = scmp.lt.s32.totalorder %s17, 1
        %s178 = scalar_select %p177, %s17, 1
        %p179 = scmp.lt.s32.totalorder %s176, 1
        %s180 = scalar_select %p179, %s176, 1
        %s181 = smul.addr %s178, 2
        %s182 = sadd.s32 %s180, %s181
        %s183 = smul.addr %s182, 4
        %s184 = scalar_lea.vmem %s0, %s183
        %s185 = smul.u32 2, %s18
      $region28: #{resblock_forward.5} parent=23 // pred_fallthru
        _
      // Predicated region
      $region29: #{resblock_forward.5} parent=23 // pred_check
        %p186 = pneg %p114
      $region30: #{resblock_forward.5} parent=23 // pred_check_branch
        %188 = sbr.rel (%p186) target = $region32
      $region31: #{resblock_forward.5} parent=23 // pred_region
        %s189 = smul.u32 2, %s18
        %p190 = scmp.lt.s32.totalorder %s17, 1
        %s191 = scalar_select %p190, %s17, 1
        %p192 = scmp.lt.s32.totalorder %s189, 1
        %s193 = scalar_select %p192, %s189, 1
        %s194 = smul.addr %s191, 2
        %s195 = sadd.s32 %s193, %s194
        %s196 = smul.addr %s195, 4
        %s197 = scalar_lea.vmem %s3, %s196
        %s198 = smul.u32 2, %s18
      $region32: #{resblock_forward.5} parent=23 // pred_fallthru
        _
    $region24: #{resblock_forward.5} parent=5 // pred_fallthru
      _
    %p199 = scmp.le.s32.totalorder 1, %s10
    %p200 = scmp.lt.s32.totalorder %s10, 3
    %p201 = pnand %p199, %p200
    %p202 = pneg %p201
    // Predicated region
    $region33: #{resblock_forward.5} parent=5 // pred_check
      _
    $region34: #{resblock_forward.5} parent=5 // pred_check_branch
      %204 = sbr.rel (%p201) target = $region36
    $region35: #{resblock_forward.5} parent=5 // pred_region
      %s205 = ssub.s32 %s10, 1
      %s206 = smul.u32 2, %s20
      %p207 = scmp.lt.s32.totalorder %s19, 1
      %s208 = scalar_select %p207, %s19, 1
      %p209 = scmp.lt.s32.totalorder %s206, 1
      %s210 = scalar_select %p209, %s206, 1
      %s211 = smul.addr %s208, 2
      %s212 = sadd.s32 %s210, %s211
      %s213 = smul.addr %s212, 4
      %s214 = scalar_lea.vmem %s0, %s213
      %p215 = pneg %p50
      %p216 = pneg %p47
      %p217 = pneg %p71
      %p218 = pneg %p68
      %p219 = pneg %p92
      %p220 = pneg %p89
      %s221 = smul.u32 2, %s20
      %p222 = scmp.lt.s32.totalorder %s19, 1
      %s223 = scalar_select %p222, %s19, 1
      %p224 = scmp.lt.s32.totalorder %s221, 1
      %s225 = scalar_select %p224, %s221, 1
      %s226 = smul.addr %s223, 2
      %s227 = sadd.s32 %s225, %s226
      %s228 = smul.addr %s227, 4
      %s229 = scalar_lea.vmem %s3, %s228
      %p230 = pneg %p120
      %p231 = pneg %p117
      %p232 = pneg %p148
      %p233 = pneg %p145
      %s234 = smul.u32 2, %s20
      %p235 = scmp.lt.s32.totalorder %s19, 1
      %s236 = scalar_select %p235, %s19, 1
      %p237 = scmp.lt.s32.totalorder %s234, 1
      %s238 = scalar_select %p237, %s234, 1
      %s239 = smul.addr %s236, 2
      %s240 = sadd.s32 %s238, %s239
      %s241 = smul.addr %s240, 4
      %s242 = scalar_lea.vmem %s4, %s241
      %s243 = smul.u32 2, %s20
      %p244 = scmp.lt.s32.totalorder %s19, 1
      %s245 = scalar_select %p244, %s19, 1
      %p246 = scmp.lt.s32.totalorder %s243, 1
      %s247 = scalar_select %p246, %s243, 1
      %s248 = smul.addr %s245, 2
      %s249 = sadd.s32 %s247, %s248
      %s250 = smul.addr %s249, 4
      %s251 = scalar_lea.vmem %s0, %s250
      %s252 = smul.u32 2, %s20
      %s253 = smul.u32 2, %s20
      %p254 = scmp.lt.s32.totalorder %s19, 1
      %s255 = scalar_select %p254, %s19, 1
      %p256 = scmp.lt.s32.totalorder %s253, 1
      %s257 = scalar_select %p256, %s253, 1
      %s258 = smul.addr %s255, 2
      %s259 = sadd.s32 %s257, %s258
      %s260 = smul.addr %s259, 4
      %s261 = scalar_lea.vmem %s3, %s260
      %s262 = smul.u32 2, %s20
      %s263 = smul.u32 2, %s20
      %p264 = scmp.lt.s32.totalorder %s19, 1
      %s265 = scalar_select %p264, %s19, 1
      %p266 = scmp.lt.s32.totalorder %s263, 1
      %s267 = scalar_select %p266, %s263, 1
      %s268 = smul.addr %s265, 2
      %s269 = sadd.s32 %s267, %s268
      %s270 = smul.addr %s269, 4
      %s271 = scalar_lea.vmem %s4, %s270
      %s272 = smul.u32 2, %s20
      %v273 = vld [vmem:[%s251] sm:$0xff]
      %v274 = vld [vmem:[%s1] sm:$0xf]
      %276 = vset.pattern.permute.xlu0 0
      %277 = vperm.xlu0 %276, %v274
      %v278 = vpop.permute.xlu0 %277
      %v280 = vunpack.c.l.s4 839922192
      %v281 = vunpack.c.0.s8 %v280
      %v282 = vlaneseq
      %v283 = vshrl.u32 %v282, 7
      %v284 = vsub.s32 %v281, %v283
      %v285 = vrot.slane %v278, %v284
      %v287 = vmul.f32 %v273, %v285
      %v288 = vld [vmem:[%s2] sm:$0xf]
      %290 = vset.pattern.permute.xlu0 0
      %291 = vperm.xlu0 %290, %v288
      %v292 = vpop.permute.xlu0 %291
      %v294 = vunpack.c.l.s4 839922192
      %v295 = vunpack.c.0.s8 %v294
      %v296 = vlaneseq
      %v297 = vshrl.u32 %v296, 7
      %v298 = vsub.s32 %v295, %v297
      %v299 = vrot.slane %v292, %v298
      %v301 = vadd.f32 %v287, %v299
      %v302 = vld [vmem:[%s261] sm:$0xff]
      %v303 = vadd.f32 %v301, %v302
      %v304 = vmax.f32 %v303, 0.0
      %305 = vst [vmem:[%s271] sm:$0xff] %v304
      %s306 = smul.u32 2, %s20
      %p307 = scmp.lt.s32.totalorder %s19, 1
      %s308 = scalar_select %p307, %s19, 1
      %p309 = scmp.lt.s32.totalorder %s306, 1
      %s310 = scalar_select %p309, %s306, 1
      %s311 = smul.addr %s308, 2
      %s312 = sadd.s32 %s310, %s311
      %s313 = smul.addr %s312, 4
      %s314 = scalar_lea.vmem %s4, %s313
      // Predicated region
      $region37: #{resblock_forward.5} parent=35 // pred_check
        %p315 = pneg %p145
      $region38: #{resblock_forward.5} parent=35 // pred_check_branch
        %317 = sbr.rel (%p315) target = $region40
      $region39: #{resblock_forward.5} parent=35 // pred_region
        %s318 = smul.u32 2, %s20
      $region40: #{resblock_forward.5} parent=35 // pred_fallthru
        _
    $region36: #{resblock_forward.5} parent=5 // pred_fallthru
      _
    %p319 = scmp.le.s32.totalorder 2, %s10
    // Predicated region
    $region41: #{resblock_forward.5} parent=5 // pred_check
      %p320 = pneg %p319
    $region42: #{resblock_forward.5} parent=5 // pred_check_branch
      %322 = sbr.rel (%p320) target = $region44
    $region43: #{resblock_forward.5} parent=5 // pred_region
      %s323 = ssub.s32 %s10, 2
      // Predicated region
      $region45: #{resblock_forward.5} parent=43 // pred_check
        %p324 = pneg %p151
      $region46: #{resblock_forward.5} parent=43 // pred_check_branch
        %326 = sbr.rel (%p324) target = $region48
      $region47: #{resblock_forward.5} parent=43 // pred_region
        %s327 = smul.u32 2, %s22
        %p328 = scmp.lt.s32.totalorder %s21, 1
        %s329 = scalar_select %p328, %s21, 1
        %p330 = scmp.lt.s32.totalorder %s327, 1
        %s331 = scalar_select %p330, %s327, 1
        %s332 = smul.addr %s329, 2
        %s333 = sadd.s32 %s331, %s332
        %s334 = smul.addr %s333, 4
        %s335 = scalar_lea.vmem %s4, %s334
      $region48: #{resblock_forward.5} parent=43 // pred_fallthru
        _
    $region44: #{resblock_forward.5} parent=5 // pred_fallthru
      _
  $region6: #{resblock_forward.5} parent=0 // loop_footer
    %s14 = sadd.s32 1, %s10
  $region7: #{resblock_forward.5} parent=0 // loop_footer_branch
    %9 = sbr.rel target = $region3
  $region8: #{resblock_forward.5} parent=0 // loop_exit
    _

// kernel: resblock_forward.4
$region0: #{resblock_forward.4}
  #allocation0 [shape = 'u32[]', space=smem, size = 0x4, offset = 0x4, fixed_abs, tag = 'smem constant byte address 0x4 - core index']
  #allocation1 [shape = 'u32[144,128]{1,0:T(1,128)}', space=vmem, size = 0x12000, scoped, tag = 'internal scratch']
  %s0 = inlined_call_operand.vmem [shape: f32[2,4,256], index: 0, kind: input, shape index: {}]
  %s1 = inlined_call_operand.vmem [shape: f32[4,1], index: 1, kind: input, shape index: {}]
  %s2 = inlined_call_operand.vmem [shape: f32[4,1], index: 2, kind: input, shape index: {}]
  %s3 = inlined_call_operand.vmem [shape: f32[4,4], index: 3, kind: input, shape index: {}]
  %s4 = inlined_call_operand.vmem [shape: f32[2,4,256], index: 4, kind: output, shape index: {0}]
  %s5 = inlined_call_operand.vmem [shape: f32[4,2], index: 5, kind: output, shape index: {1}]
  %6 = xla_tuple %s4, %s5
  %s7 = sld [smem:[#allocation0]]
  $region61: #{resblock_forward.4} parent=0
    _
  %s9 = ssub.s32 1, %s7
  %s10 = scalar_select 0, %s9, %s7
  loop: start=0, step=1, limit=4
  $region2: #{resblock_forward.4} parent=0 // loop_pre_header
    _
  $region3: #{resblock_forward.4} parent=0 // loop_header
    %s12 = sphi 0, %s16
    %p13 = scmp.ge.s32.totalorder %s12, 4
    %s19 = sphi 0, %s31
    %s20 = sphi 0, %s27
    %s21 = sphi 0, %s19
    %s22 = sphi 0, %s20
    %s23 = sphi 0, %s21
    %s24 = sphi 0, %s22
    %s36 = sphi 0, %s38
    %s39 = sphi 0, %s36
    %s40 = sphi 0, %s39
    %s56 = sphi 0, %s40
    %s60 = sphi 0, %s60
    %s62 = sphi 0, %s60
    %s63 = sphi 0, %s62
    %s77 = sphi 0, %s63
    %s81 = sphi 0, %s81
    %s83 = sphi 0, %s81
    %s84 = sphi 0, %s83
    %s98 = sphi 0, %s84
    %s102 = sphi 0, %s102
    %s104 = sphi 0, %s102
    %s105 = sphi 0, %s104
    %s119 = sphi 0, %s105
    %s127 = sphi 0, %s129
    %s130 = sphi 0, %s127
    %s131 = sphi 0, %s130
    %s147 = sphi 0, %s131
    %s151 = sphi 0, %s151
    %s153 = sphi 0, %s151
    %s154 = sphi 0, %s153
    %s168 = sphi 0, %s154
  $region4: #{resblock_forward.4} parent=0 // loop_header_branch
    %15 = sbr.rel (%p13) target = $region8
  $region5: #{resblock_forward.4} parent=0 // loop_body
    %s17 = ssub.s32 %s12, 1
    %s18 = ssub.s32 %s12, 2
    %s25 = sadd.s32 1, %s20
    %p26 = scmp.ge.s32.totalorder %s25, 1
    %s27 = scalar_select %p26, 0, %s25
    %s28 = sadd.s32 1, %s19
    %s29 = scalar_select %p26, %s28, %s19
    %p30 = scmp.ge.s32.totalorder %s29, 2
    %s31 = scalar_select %p30, 0, %s29
    %s32 = ssub.s32 %s19, %s31
    %s33 = ssub.s32 %s20, %s27
    %s34 = sor.u32 %s32, %s33
    %p35 = scmp.eq.s32.totalorder %s34, 0
    %s37 = sadd.s32 %s36, 1
    %s38 = scalar_select %p35, %s36, %s37
    %p41 = pneg %p35
    %p42 = scmp.eq.s32.totalorder %s12, 1
    %p43 = por %p41, %p42
    %p44 = scmp.ne.s32.totalorder %s36, %s39
    %p45 = scmp.eq.s32.totalorder %s12, 0
    %p46 = por %p44, %p45
    %p47 = scmp.ne.s32.totalorder %s36, %s39
    %p48 = scmp.eq.s32.totalorder %s17, 1
    %p49 = por %p47, %p48
    %p50 = scmp.ne.s32.totalorder %s39, %s40
    %p51 = scmp.eq.s32.totalorder %s17, 0
    %p52 = por %p50, %p51
    %p53 = scmp.ne.s32.totalorder %s39, %s40
    %p54 = scmp.eq.s32.totalorder %s18, 1
    %p55 = por %p53, %p54
    %p57 = scmp.ne.s32.totalorder %s40, %s56
    %p58 = scmp.eq.s32.totalorder %s18, 0
    %p59 = por %p57, %p58
    %s61 = sadd.s32 %s60, 1
    %p64 = scmp.eq.s32.totalorder %s12, 1
    %p65 = scmp.ne.s32.totalorder %s60, %s62
    %p66 = scmp.eq.s32.totalorder %s12, 0
    %p67 = por %p65, %p66
    %p68 = scmp.ne.s32.totalorder %s60, %s62
    %p69 = scmp.eq.s32.totalorder %s17, 1
    %p70 = por %p68, %p69
    %p71 = scmp.ne.s32.totalorder %s62, %s63
    %p72 = scmp.eq.s32.totalorder %s17, 0
    %p73 = por %p71, %p72
    %p74 = scmp.ne.s32.totalorder %s62, %s63
    %p75 = scmp.eq.s32.totalorder %s18, 1
    %p76 = por %p74, %p75
    %p78 = scmp.ne.s32.totalorder %s63, %s77
    %p79 = scmp.eq.s32.totalorder %s18, 0
    %p80 = por %p78, %p79
    %s82 = sadd.s32 %s81, 1
    %p85 = scmp.eq.s32.totalorder %s12, 1
    %p86 = scmp.ne.s32.totalorder %s81, %s83
    %p87 = scmp.eq.s32.totalorder %s12, 0
    %p88 = por %p86, %p87
    %p89 = scmp.ne.s32.totalorder %s81, %s83
    %p90 = scmp.eq.s32.totalorder %s17, 1
    %p91 = por %p89, %p90
    %p92 = scmp.ne.s32.totalorder %s83, %s84
    %p93 = scmp.eq.s32.totalorder %s17, 0
    %p94 = por %p92, %p93
    %p95 = scmp.ne.s32.totalorder %s83, %s84
    %p96 = scmp.eq.s32.totalorder %s18, 1
    %p97 = por %p95, %p96
    %p99 = scmp.ne.s32.totalorder %s84, %s98
    %p100 = scmp.eq.s32.totalorder %s18, 0
    %p101 = por %p99, %p100
    %s103 = sadd.s32 %s102, 1
    %p106 = scmp.eq.s32.totalorder %s12, 1
    %p107 = scmp.ne.s32.totalorder %s102, %s104
    %p108 = scmp.eq.s32.totalorder %s12, 0
    %p109 = por %p107, %p108
    %p110 = scmp.ne.s32.totalorder %s102, %s104
    %p111 = scmp.eq.s32.totalorder %s17, 1
    %p112 = por %p110, %p111
    %p113 = scmp.ne.s32.totalorder %s104, %s105
    %p114 = scmp.eq.s32.totalorder %s17, 0
    %p115 = por %p113, %p114
    %p116 = scmp.ne.s32.totalorder %s104, %s105
    %p117 = scmp.eq.s32.totalorder %s18, 1
    %p118 = por %p116, %p117
    %p120 = scmp.ne.s32.totalorder %s105, %s119
    %p121 = scmp.eq.s32.totalorder %s18, 0
    %p122 = por %p120, %p121
    %s123 = ssub.s32 %s19, %s31
    %s124 = ssub.s32 %s20, %s27
    %s125 = sor.u32 %s123, %s124
    %p126 = scmp.eq.s32.totalorder %s125, 0
    %s128 = sadd.s32 %s127, 1
    %s129 = scalar_select %p126, %s127, %s128
    %p132 = pneg %p126
    %p133 = scmp.eq.s32.totalorder %s12, 1
    %p134 = por %p132, %p133
    %p135 = scmp.ne.s32.totalorder %s127, %s130
    %p136 = scmp.eq.s32.totalorder %s12, 0
    %p137 = por %p135, %p136
    %p138 = scmp.ne.s32.totalorder %s127, %s130
    %p139 = scmp.eq.s32.totalorder %s17, 1
    %p140 = por %p138, %p139
    %p141 = scmp.ne.s32.totalorder %s130, %s131
    %p142 = scmp.eq.s32.totalorder %s17, 0
    %p143 = por %p141, %p142
    %p144 = scmp.ne.s32.totalorder %s130, %s131
    %p145 = scmp.eq.s32.totalorder %s18, 1
    %p146 = por %p144, %p145
    %p148 = scmp.ne.s32.totalorder %s131, %s147
    %p149 = scmp.eq.s32.totalorder %s18, 0
    %p150 = por %p148, %p149
    %s152 = sadd.s32 %s151, 1
    %p155 = scmp.eq.s32.totalorder %s12, 1
    %p156 = scmp.ne.s32.totalorder %s151, %s153
    %p157 = scmp.eq.s32.totalorder %s12, 0
    %p158 = por %p156, %p157
    %p159 = scmp.ne.s32.totalorder %s151, %s153
    %p160 = scmp.eq.s32.totalorder %s17, 1
    %p161 = por %p159, %p160
    %p162 = scmp.ne.s32.totalorder %s153, %s154
    %p163 = scmp.eq.s32.totalorder %s17, 0
    %p164 = por %p162, %p163
    %p165 = scmp.ne.s32.totalorder %s153, %s154
    %p166 = scmp.eq.s32.totalorder %s18, 1
    %p167 = por %p165, %p166
    %p169 = scmp.ne.s32.totalorder %s154, %s168
    %p170 = scmp.eq.s32.totalorder %s18, 0
    %p171 = por %p169, %p170
    %p172 = scmp.le.s32.totalorder 1, %s12
    %p173 = scmp.lt.s32.totalorder %s12, 3
    %p174 = pnand %p172, %p173
    %p175 = pneg %p174
    // Predicated region
    $region9: #{resblock_forward.4} parent=5 // pred_check
      _
    $region10: #{resblock_forward.4} parent=5 // pred_check_branch
      %177 = sbr.rel (%p174) target = $region12
    $region11: #{resblock_forward.4} parent=5 // pred_region
      %s178 = ssub.s32 %s12, 1
      // Predicated region
      $region13: #{resblock_forward.4} parent=11 // pred_check
        %p179 = pneg %p73
      $region14: #{resblock_forward.4} parent=11 // pred_check_branch
        %181 = sbr.rel (%p179) target = $region16
      $region15: #{resblock_forward.4} parent=11 // pred_region
        _
      $region16: #{resblock_forward.4} parent=11 // pred_fallthru
        _
      // Predicated region
      $region17: #{resblock_forward.4} parent=11 // pred_check
        %p182 = pneg %p94
      $region18: #{resblock_forward.4} parent=11 // pred_check_branch
        %184 = sbr.rel (%p182) target = $region20
      $region19: #{resblock_forward.4} parent=11 // pred_region
        _
      $region20: #{resblock_forward.4} parent=11 // pred_fallthru
        _
      // Predicated region
      $region21: #{resblock_forward.4} parent=11 // pred_check
        %p185 = pneg %p115
      $region22: #{resblock_forward.4} parent=11 // pred_check_branch
        %187 = sbr.rel (%p185) target = $region24
      $region23: #{resblock_forward.4} parent=11 // pred_region
        _
      $region24: #{resblock_forward.4} parent=11 // pred_fallthru
        _
    $region12: #{resblock_forward.4} parent=5 // pred_fallthru
      _
    %p188 = scmp.lt.s32.totalorder %s12, 2
    // Predicated region
    $region25: #{resblock_forward.4} parent=5 // pred_check
      %p189 = pneg %p188
    $region26: #{resblock_forward.4} parent=5 // pred_check_branch
      %191 = sbr.rel (%p189) target = $region28
    $region27: #{resblock_forward.4} parent=5 // pred_region
      // Predicated region
      $region29: #{resblock_forward.4} parent=27 // pred_check
        %p192 = pneg %p46
      $region30: #{resblock_forward.4} parent=27 // pred_check_branch
        %194 = sbr.rel (%p192) target = $region32
      $region31: #{resblock_forward.4} parent=27 // pred_region
        %s195 = smul.u32 2, %s20
        %p196 = scmp.lt.s32.totalorder %s19, 1
        %s197 = scalar_select %p196, %s19, 1
        %p198 = scmp.lt.s32.totalorder %s195, 1
        %s199 = scalar_select %p198, %s195, 1
        %s200 = smul.addr %s197, 2
        %s201 = sadd.s32 %s199, %s200
        %s202 = smul.addr %s201, 4
        %s203 = scalar_lea.vmem %s0, %s202
        %s204 = smul.u32 2, %s20
      $region32: #{resblock_forward.4} parent=27 // pred_fallthru
        _
    $region28: #{resblock_forward.4} parent=5 // pred_fallthru
      _
    %p205 = scmp.le.s32.totalorder 1, %s12
    %p206 = scmp.lt.s32.totalorder %s12, 3
    %p207 = pnand %p205, %p206
    %p208 = pneg %p207
    // Predicated region
    $region33: #{resblock_forward.4} parent=5 // pred_check
      _
    $region34: #{resblock_forward.4} parent=5 // pred_check_branch
      %210 = sbr.rel (%p207) target = $region36
    $region35: #{resblock_forward.4} parent=5 // pred_region
      %s211 = ssub.s32 %s12, 1
      %s212 = smul.u32 2, %s22
      %p213 = scmp.lt.s32.totalorder %s21, 1
      %s214 = scalar_select %p213, %s21, 1
      %p215 = scmp.lt.s32.totalorder %s212, 1
      %s216 = scalar_select %p215, %s212, 1
      %s217 = smul.addr %s214, 2
      %s218 = sadd.s32 %s216, %s217
      %s219 = smul.addr %s218, 4
      %s220 = scalar_lea.vmem %s0, %s219
      %p221 = pneg %p52
      %p222 = pneg %p49
      %p223 = pneg %p73
      %p224 = pneg %p70
      %p225 = pneg %p94
      %p226 = pneg %p91
      %p227 = pneg %p115
      %p228 = pneg %p112
      %p229 = pneg %p143
      %p230 = pneg %p140
      %s231 = smul.u32 2, %s22
      %p232 = scmp.lt.s32.totalorder %s21, 1
      %s233 = scalar_select %p232, %s21, 1
      %p234 = scmp.lt.s32.totalorder %s231, 1
      %s235 = scalar_select %p234, %s231, 1
      %s236 = smul.addr %s233, 2
      %s237 = sadd.s32 %s235, %s236
      %s238 = smul.addr %s237, 4
      %s239 = scalar_lea.vmem %s4, %s238
      %p240 = pneg %p164
      %p241 = pneg %p161
      %s242 = smul.u32 2, %s22
      %p243 = scmp.lt.s32.totalorder %s21, 1
      %s244 = scalar_select %p243, %s21, 1
      %p245 = scmp.lt.s32.totalorder %s242, 1
      %s246 = scalar_select %p245, %s242, 1
      %s247 = smul.addr %s244, 2
      %s248 = sadd.s32 %s246, %s247
      %s249 = smul.addr %s248, 4
      %s250 = scalar_lea.vmem %s0, %s249
      %s251 = smul.u32 2, %s22
      %s252 = smul.u32 2, %s22
      %p253 = scmp.lt.s32.totalorder %s21, 1
      %s254 = scalar_select %p253, %s21, 1
      %p255 = scmp.lt.s32.totalorder %s252, 1
      %s256 = scalar_select %p255, %s252, 1
      %s257 = smul.addr %s254, 2
      %s258 = sadd.s32 %s256, %s257
      %s259 = smul.addr %s258, 4
      %s260 = scalar_lea.vmem %s4, %s259
      %s261 = smul.u32 2, %s22
      %p262 = scmp.eq.s32.totalorder %s21, 0
      %p263 = scmp.eq.s32.totalorder %s22, 0
      %p264 = pnand %p262, %p263
      %p265 = pneg %p264
      // Predicated region
      $region37: #{resblock_forward.4} parent=35 // pred_check
        _
      $region38: #{resblock_forward.4} parent=35 // pred_check_branch
        %267 = sbr.rel (%p264) target = $region40
      $region39: #{resblock_forward.4} parent=35 // pred_region
        %vm268 = vcmask 11264
        %269 = vst.msk [vmem:[%s5] sm:$0xf] %vm268, 0.0
      $region40: #{resblock_forward.4} parent=35 // pred_fallthru
        _
      %v270 = vld [vmem:[%s250] sm:$0xff]
      %v271 = vld [vmem:[%s1] sm:$0xf]
      %273 = vset.pattern.permute.xlu0 0
      %274 = vperm.xlu0 %273, %v271
      %v275 = vpop.permute.xlu0 %274
      %v277 = vunpack.c.l.s4 839922192
      %v278 = vunpack.c.0.s8 %v277
      %v279 = vlaneseq
      %v280 = vshrl.u32 %v279, 7
      %v281 = vsub.s32 %v278, %v280
      %v282 = vrot.slane %v275, %v281
      %v284 = vmul.f32 %v270, %v282
      %v285 = vld [vmem:[%s2] sm:$0xf]
      %287 = vset.pattern.permute.xlu0 0
      %288 = vperm.xlu0 %287, %v285
      %v289 = vpop.permute.xlu0 %288
      %v291 = vunpack.c.l.s4 839922192
      %v292 = vunpack.c.0.s8 %v291
      %v293 = vlaneseq
      %v294 = vshrl.u32 %v293, 7
      %v295 = vsub.s32 %v292, %v294
      %v296 = vrot.slane %v289, %v295
      %v298 = vadd.f32 %v284, %v296
      %v299 = vmax.f32 %v298, 0.0
      %v300 = vld [vmem:[%s3] sm:$0xf]
      %v302 = vlaneseq
      %v303 = vshrl.u32 %v302, 7
      %v304 = vsub.s32 0, %v303
      %v305 = vrot.slane %v299, %v304
      %v306 = vlaneseq
      %v307 = vshrl.u32 %v306, 7
      %v308 = vsub.s32 4, %v307
      %v309 = vrot.slane %v299, %v308
      %v312 = vlaneseq
      %v313 = vshrl.u32 %v312, 7
      %v314 = vsub.s32 0, %v313
      %v315 = vrot.slane %v305, %v314
      %v316 = vlaneseq
      %v317 = vshrl.u32 %v316, 7
      %v318 = vsub.s32 0, %v317
      %v319 = vrot.slane %v309, %v318
      %321 = vset.pattern.permute.xlu0 0
      %322 = vperm.xlu0 %321, %v300
      %v323 = vpop.permute.xlu0 %322
      %v325 = vsub.f32 %v315, %v323
      %v326 = vsub.f32 %v319, %v323
      %v327 = vand.u32 2147483647, %v325
      %v328 = vand.u32 2147483647, %v326
      %v329 = vadd.f32 %v327, 0.0
      %v330 = vadd.f32 %v328, 0.0
      %v331 = vlaneseq
      %v332 = vshrl.u32 %v331, 7
      %v333 = vsub.s32 1, %v332
      %v334 = vrot.slane %v299, %v333
      %v335 = vlaneseq
      %v336 = vshrl.u32 %v335, 7
      %v337 = vsub.s32 5, %v336
      %v338 = vrot.slane %v299, %v337
      %v341 = vlaneseq
      %v342 = vshrl.u32 %v341, 7
      %v343 = vsub.s32 1, %v342
      %v344 = vrot.slane %v334, %v343
      %v345 = vlaneseq
      %v346 = vshrl.u32 %v345, 7
      %v347 = vsub.s32 1, %v346
      %v348 = vrot.slane %v338, %v347
      %349 = vset.pattern.permute.xlu0 1
      %350 = vperm.xlu0 %349, %v300
      %v351 = vpop.permute.xlu0 %350
      %v353 = vsub.f32 %v344, %v351
      %v354 = vsub.f32 %v348, %v351
      %v355 = vand.u32 2147483647, %v353
      %v356 = vand.u32 2147483647, %v354
      %v357 = vadd.f32 %v329, %v355
      %v358 = vadd.f32 %v330, %v356
      %v359 = vlaneseq
      %v360 = vshrl.u32 %v359, 7
      %v361 = vsub.s32 2, %v360
      %v362 = vrot.slane %v299, %v361
      %v363 = vlaneseq
      %v364 = vshrl.u32 %v363, 7
      %v365 = vsub.s32 6, %v364
      %v366 = vrot.slane %v299, %v365
      %v369 = vlaneseq
      %v370 = vshrl.u32 %v369, 7
      %v371 = vsub.s32 2, %v370
      %v372 = vrot.slane %v362, %v371
      %v373 = vlaneseq
      %v374 = vshrl.u32 %v373, 7
      %v375 = vsub.s32 2, %v374
      %v376 = vrot.slane %v366, %v375
      %377 = vset.pattern.permute.xlu0 2
      %378 = vperm.xlu0 %377, %v300
      %v379 = vpop.permute.xlu0 %378
      %v381 = vsub.f32 %v372, %v379
      %v382 = vsub.f32 %v376, %v379
      %v383 = vand.u32 2147483647, %v381
      %v384 = vand.u32 2147483647, %v382
      %v385 = vadd.f32 %v357, %v383
      %v386 = vadd.f32 %v358, %v384
      %v387 = vlaneseq
      %v388 = vshrl.u32 %v387, 7
      %v389 = vsub.s32 3, %v388
      %v390 = vrot.slane %v299, %v389
      %v391 = vlaneseq
      %v392 = vshrl.u32 %v391, 7
      %v393 = vsub.s32 7, %v392
      %v394 = vrot.slane %v299, %v393
      %v397 = vlaneseq
      %v398 = vshrl.u32 %v397, 7
      %v399 = vsub.s32 3, %v398
      %v400 = vrot.slane %v390, %v399
      %v401 = vlaneseq
      %v402 = vshrl.u32 %v401, 7
      %v403 = vsub.s32 3, %v402
      %v404 = vrot.slane %v394, %v403
      %405 = vset.pattern.permute.xlu0 3
      %406 = vperm.xlu0 %405, %v300
      %v407 = vpop.permute.xlu0 %406
      %v409 = vsub.f32 %v400, %v407
      %v410 = vsub.f32 %v404, %v407
      %v411 = vand.u32 2147483647, %v409
      %v412 = vand.u32 2147483647, %v410
      %v413 = vadd.f32 %v385, %v411
      %v414 = vadd.f32 %v386, %v412
      %v415 = vsub.f32 0.0, %v413
      %v416 = vsub.f32 0.0, %v414
      %v419 = vcombine.low %v415, %v416
      %421 = vst [vmem:[%s260] sm:$0xff] %v419
      %vm422 = vcmask 1043456
      %v423 = vsel %vm422, %v415, 0.0
      %v424 = vsel %vm422, %v416, 0.0
      %v425 = vadd.f32 %v423, %v424
      %426 = vadd.xlane.f32.xlu0 %v425
      %v427 = vpop.xlane.xlu0 %426
      %v428 = vmul.f32 %v415, %v415
      %v429 = vmul.f32 %v416, %v416
      %v430 = vsel %vm422, %v428, 0.0
      %v431 = vsel %vm422, %v429, 0.0
      %v432 = vadd.f32 %v430, %v431
      %433 = vadd.xlane.f32.xlu0 %v432
      %v434 = vpop.xlane.xlu0 %433
      %v435 = vld [vmem:[%s5] sm:$0xf]
      %vm436 = vcmask 7168
      %v437 = vsel %vm436, %v427, %v434
      %v438 = vadd.f32 %v435, %v437
      %vm439 = vcmask 11264
      %440 = vst.msk [vmem:[%s5] sm:$0xf] %vm439, %v438
      %s441 = smul.u32 2, %s22
      %p442 = scmp.lt.s32.totalorder %s21, 1
      %s443 = scalar_select %p442, %s21, 1
      %p444 = scmp.lt.s32.totalorder %s441, 1
      %s445 = scalar_select %p444, %s441, 1
      %s446 = smul.addr %s443, 2
      %s447 = sadd.s32 %s445, %s446
      %s448 = smul.addr %s447, 4
      %s449 = scalar_lea.vmem %s4, %s448
      // Predicated region
      $region41: #{resblock_forward.4} parent=35 // pred_check
        %p450 = pneg %p140
      $region42: #{resblock_forward.4} parent=35 // pred_check_branch
        %452 = sbr.rel (%p450) target = $region44
      $region43: #{resblock_forward.4} parent=35 // pred_region
        %s453 = smul.u32 2, %s22
      $region44: #{resblock_forward.4} parent=35 // pred_fallthru
        _
      // Predicated region
      $region45: #{resblock_forward.4} parent=35 // pred_check
        %p454 = pneg %p161
      $region46: #{resblock_forward.4} parent=35 // pred_check_branch
        %456 = sbr.rel (%p454) target = $region48
      $region47: #{resblock_forward.4} parent=35 // pred_region
        _
      $region48: #{resblock_forward.4} parent=35 // pred_fallthru
        _
      // Predicated region
      $region49: #{resblock_forward.4} parent=35 // pred_check
        %p457 = pneg %p161
      $region50: #{resblock_forward.4} parent=35 // pred_check_branch
        %459 = sbr.rel (%p457) target = $region52
      $region51: #{resblock_forward.4} parent=35 // pred_region
        _
      $region52: #{resblock_forward.4} parent=35 // pred_fallthru
        _
    $region36: #{resblock_forward.4} parent=5 // pred_fallthru
      _
    %p460 = scmp.le.s32.totalorder 2, %s12
    // Predicated region
    $region53: #{resblock_forward.4} parent=5 // pred_check
      %p461 = pneg %p460
    $region54: #{resblock_forward.4} parent=5 // pred_check_branch
      %463 = sbr.rel (%p461) target = $region56
    $region55: #{resblock_forward.4} parent=5 // pred_region
      %s464 = ssub.s32 %s12, 2
      // Predicated region
      $region57: #{resblock_forward.4} parent=55 // pred_check
        %p465 = pneg %p146
      $region58: #{resblock_forward.4} parent=55 // pred_check_branch
        %467 = sbr.rel (%p465) target = $region60
      $region59: #{resblock_forward.4} parent=55 // pred_region
        %s468 = smul.u32 2, %s24
        %p469 = scmp.lt.s32.totalorder %s23, 1
        %s470 = scalar_select %p469, %s23, 1
        %p471 = scmp.lt.s32.totalorder %s468, 1
        %s472 = scalar_select %p471, %s468, 1
        %s473 = smul.addr %s470, 2
        %s474 = sadd.s32 %s472, %s473
        %s475 = smul.addr %s474, 4
        %s476 = scalar_lea.vmem %s4, %s475
      $region60: #{resblock_forward.4} parent=55 // pred_fallthru
        _
    $region56: #{resblock_forward.4} parent=5 // pred_fallthru
      _
  $region6: #{resblock_forward.4} parent=0 // loop_footer
    %s16 = sadd.s32 1, %s12
  $region7: #{resblock_forward.4} parent=0 // loop_footer_branch
    %11 = sbr.rel target = $region3
  $region8: #{resblock_forward.4} parent=0 // loop_exit
    _

</llo_original>
